<compile_context>
chip_gen: v6e
topology: v6e:2x2x1
jax: 0.10.0
libtpu: 0.0.40
codegen_flags: <defaults>
</compile_context>

<pallas_src>
import jax
import jax.numpy as jnp
from jax.experimental import pallas as pl
from jax.experimental.pallas import tpu as pltpu

_MIB = 1 << 20


def _lora_diff_kernel_accout(x_ref, w_ref, xa_ref, b_ref, o_ref):
    """One (tm, tn) tile of y = x @ W + xA @ B, accumulating directly in o_ref.

    Used when the output dtype is f32: the output BlockSpec returns the same
    block index across k, so the block stays resident in VMEM and doubles as
    the accumulator (saves tm*tn*4 B of scratch and the final copy).
    """
    k = pl.program_id(2)

    @pl.when(k == 0)
    def _():
        # Seed with the (tiny) low-rank term instead of a zero-fill.
        o_ref[...] = jnp.dot(xa_ref[...], b_ref[...],
                             preferred_element_type=jnp.float32)

    o_ref[...] += jnp.dot(x_ref[...], w_ref[...],
                          preferred_element_type=jnp.float32)


def _lora_diff_kernel_scratch(x_ref, w_ref, xa_ref, b_ref, o_ref, acc_ref):
    """Same math, f32 scratch accumulator (for non-f32 output dtypes)."""
    k = pl.program_id(2)

    @pl.when(k == 0)
    def _():
        acc_ref[...] = jnp.dot(xa_ref[...], b_ref[...],
                               preferred_element_type=jnp.float32)

    acc_ref[...] += jnp.dot(x_ref[...], w_ref[...],
                            preferred_element_type=jnp.float32)

    @pl.when(k == pl.num_programs(2) - 1)
    def _():
        o_ref[...] = acc_ref[...].astype(o_ref.dtype)


def _device_tile_defaults():
    """Per-generation (tm, tn, tk, vmem_cap) defaults, roofline-driven."""
    try:
        kind = jax.devices()[0].device_kind.lower()
    except Exception:
        kind = ""
    if "v5 lite" in kind or "v5e" in kind or "v5litepod" in kind:
        # v5e: ~240 FLOP/B suffices; 512x512 already balances. 128 MiB physical.
        return 512, 512, 512, 96 * _MIB
    if "v6" in kind or "trillium" in kind:
        # v6e: push toward ~680 FLOP/B (918 TF/s vs ~1.35 TB/s). 128 MiB physical.
        return 1024, 2048, 1024, 96 * _MIB
    if "v7" in kind:
        # v7x: 64 MiB physical VMEM per TC; ~512 FLOP/B is enough at 3.2 TB/s.
        return 1024, 1024, 1024, 48 * _MIB
    return 512, 1024, 1024, 64 * _MIB


def lora_diff_forward(x2d, base_t, A, B, *, tm=None, tn=None, tk=None,
                      compute_dtype=jnp.bfloat16, out_dtype=None):
    """y = x2d @ base_t + (x2d @ A) @ B.

    x2d: [M, K], base_t: [K, N], A: [K, r], B: [r, N]  ->  [M, N] (out_dtype).
    """
    M, K = x2d.shape
    K2, N = base_t.shape
    assert K == K2
    r, N2 = B.shape
    assert A.shape == (K, r) and N2 == N

    d_tm, d_tn, d_tk, vmem_cap = _device_tile_defaults()
    tm = d_tm if tm is None else tm
    tn = d_tn if tn is None else tn
    tk = d_tk if tk is None else tk

    # Clamp to the problem size: small problems collapse to a single block.
    tm, tn, tk = min(tm, M), min(tn, N), min(tk, K)

    # Guarantee >= 2 steps on the parallel grid axes so megacore sharding
    # (both v7x TensorCores) gets work even for small / inference shapes.
    if (M // max(tm, 1)) * (N // max(tn, 1)) < 2:
        if tn % 256 == 0 and N % (tn // 2) == 0:
            tn //= 2
        elif tm % 16 == 0 and M % (tm // 2) == 0:
            tm //= 2

    assert M % tm == 0 and N % tn == 0 and K % tk == 0, (
        f"dims (M={M}, N={N}, K={K}) must divide the tiles "
        f"(tm={tm}, tn={tn}, tk={tk}); no remainder handling")

    out_dtype = x2d.dtype if out_dtype is None else out_dtype
    out_itemsize = jnp.dtype(out_dtype).itemsize
    in_itemsize = jnp.dtype(compute_dtype).itemsize

    # Lane-dense rank: pad r up to a multiple of 128 (zero rows/cols are inert).
    rp = ((r + 127) // 128) * 128

    # Dense path in bf16 (MXU throughput, f32 accumulation). The low-rank
    # correction stays f32: it is ~1% of the base magnitude and rank << K,
    # so the extra f32 MXU passes are negligible while preserving fidelity.
    x_c = x2d.astype(compute_dtype)
    w_c = base_t.astype(compute_dtype)
    xa = jnp.dot(x2d.astype(jnp.float32), A.astype(jnp.float32),
                 preferred_element_type=jnp.float32)            # [M, r] f32
    xa_p = jnp.pad(xa, ((0, 0), (0, rp - r)))                   # [M, rp] f32
    b_p = jnp.pad(B.astype(jnp.float32), ((0, rp - r), (0, 0)))  # [rp, N] f32

    gm, gn, gk = M // tm, N // tn, K // tk

    accumulate_in_out = jnp.dtype(out_dtype) == jnp.float32
    kernel = (_lora_diff_kernel_accout if accumulate_in_out
              else _lora_diff_kernel_scratch)
    scratch_shapes = ([] if accumulate_in_out
                      else [pltpu.VMEM((tm, tn), jnp.float32)])

    cost = pl.CostEstimate(
        flops=2 * M * N * K + 2 * M * rp * N,
        transcendentals=0,
        # Count re-streamed operands: x/xA once per N-tile, base_t/B per M-tile.
        bytes_accessed=(in_itemsize * (gn * M * K + gm * K * N)
                        + 4 * (gn * M * rp + gm * rp * N)
                        + out_itemsize * M * N),
    )

    # Double-buffered VMEM footprint -> explicit limit with headroom,
    # capped per chip (v7x only has 64 MiB physical).
    vmem_est = (2 * (tm * tk + tk * tn) * in_itemsize      # x, base_t streams
                + 2 * (tm * rp + rp * tn) * 4              # xA, B streams (f32)
                + 2 * tm * tn * out_itemsize               # output tile
                + (0 if accumulate_in_out else tm * tn * 4))
    vmem_limit = min(vmem_cap, max(32 * _MIB, int(vmem_est * 1.3) + 4 * _MIB))

    return pl.pallas_call(
        kernel,
        out_shape=jax.ShapeDtypeStruct((M, N), out_dtype),
        grid_spec=pltpu.PrefetchScalarGridSpec(
            num_scalar_prefetch=0,
            grid=(gm, gn, gk),
            in_specs=[
                pl.BlockSpec((tm, tk), lambda i, j, k: (i, k)),   # x tile (bf16)
                pl.BlockSpec((tk, tn), lambda i, j, k: (k, j)),   # base.T tile (bf16)
                pl.BlockSpec((tm, rp), lambda i, j, k: (i, 0)),   # xA tile (f32)
                pl.BlockSpec((rp, tn), lambda i, j, k: (0, j)),   # B tile (f32)
            ],
            out_specs=pl.BlockSpec((tm, tn), lambda i, j, k: (i, j)),
            scratch_shapes=scratch_shapes,
        ),
        compiler_params=pltpu.CompilerParams(
            dimension_semantics=("parallel", "parallel", "arbitrary"),
            vmem_limit_bytes=vmem_limit),
        cost_estimate=cost,
    )(x_c, w_c, xa_p, b_p)


def make_lora_diff_params(key, in_features, out_features, rank):
    """Mirrors LoRADiff.__init__ (construction-time, not part of the kernel).

    base/finetune are [out, in] (nn.Linear convention); the delta's transpose
    is factorized with an exact truncated SVD instead of torch.svd_lowrank.
    """
    kb, kf = jax.random.split(key)
    base = jax.random.normal(kb, (out_features, in_features), jnp.float32)
    finetune = base + 0.01 * jax.random.normal(kf, (out_features, in_features),
                                               jnp.float32)
    diff_t = (finetune - base).T.astype(jnp.float32)            # [in, out]
    U, S, Vt = jnp.linalg.svd(diff_t, full_matrices=False)
    Ur, Sr, Vtr = U[:, :rank], S[:rank], Vt[:rank, :]
    sqrt_s = jnp.sqrt(Sr)
    A = (Ur * sqrt_s[None, :]).astype(base.dtype)               # [in, rank]
    B = (sqrt_s[:, None] * Vtr).astype(base.dtype)              # [rank, out]
    base_t = base.T                                             # [in, out]
    return base_t, A, B


if __name__ == "__main__":
    batch, seq = 2, 64
    in_features, out_features, rank = 1024, 512, 16

    key = jax.random.PRNGKey(0)
    kp, kx = jax.random.split(key)
    base_t, A, B = make_lora_diff_params(kp, in_features, out_features, rank)

    x = jax.random.normal(kx, (batch, seq, in_features), jnp.float32)
    x2d = x.reshape(batch * seq, in_features)

    y2d = lora_diff_forward(x2d, base_t, A, B)
    y = y2d.reshape(batch, seq, out_features)
    jax.block_until_ready(y)

    # Reference: same precision recipe (bf16 dense matmul w/ f32 accumulation,
    # f32 low-rank correction) in plain XLA; the kernel only re-tiles/reorders
    # the f32 block accumulation.
    x_bf = x2d.astype(jnp.bfloat16)
    w_bf = base_t.astype(jnp.bfloat16)
    xa_f = jnp.dot(x2d, A, preferred_element_type=jnp.float32)
    y_ref = (jnp.dot(x_bf, w_bf, preferred_element_type=jnp.float32)
             + jnp.dot(xa_f, B, preferred_element_type=jnp.float32))
    assert jnp.allclose(y2d, y_ref, atol=1e-2, rtol=1e-2), "mismatch vs reference"

    print("KERNEL_OK")
</pallas_src>

<mosaic_0001>
module attributes {stable_mosaic.version = 11 : i64} {
  func.func @_lora_diff_kernel_accout(%arg0: i32, %arg1: i32, %arg2: i32, %arg3: memref<128x1024xbf16, #tpu.memory_space<vmem>>, %arg4: memref<1024x256xbf16, #tpu.memory_space<vmem>>, %arg5: memref<128x128xf32, #tpu.memory_space<vmem>>, %arg6: memref<128x256xf32, #tpu.memory_space<vmem>>, %arg7: memref<128x256xf32, #tpu.memory_space<vmem>>) attributes {dimension_semantics = [#tpu.dimension_semantics<parallel>, #tpu.dimension_semantics<parallel>, #tpu.dimension_semantics<arbitrary>], iteration_bounds = array<i64: 1, 2, 1>, scalar_prefetch = 0 : i64, scratch_operands = 0 : i64, tpu.core_type = #tpu.core_type<tc>, window_params = [{transform_indices = @transform_0, window_bounds = array<i64: 128, 1024>}, {transform_indices = @transform_1, window_bounds = array<i64: 1024, 256>}, {transform_indices = @transform_2, window_bounds = array<i64: 128, 128>}, {transform_indices = @transform_3, window_bounds = array<i64: 128, 256>}, {transform_indices = @transform_4, window_bounds = array<i64: 128, 256>}]} {
    %c0_i32 = arith.constant 0 : i32
    %0 = arith.cmpi eq, %arg2, %c0_i32 : i32
    %1 = arith.extui %0 : i1 to i32
    %c0_i32_0 = arith.constant 0 : i32
    %2 = arith.cmpi ne, %1, %c0_i32_0 : i32
    scf.if %2 {
      %c0_8 = arith.constant 0 : index
      %c0_9 = arith.constant 0 : index
      %9 = vector.load %arg5[%c0_8, %c0_9] : memref<128x128xf32, #tpu.memory_space<vmem>>, vector<128x128xf32>
      %c0_10 = arith.constant 0 : index
      %c0_11 = arith.constant 0 : index
      %10 = vector.load %arg6[%c0_10, %c0_11] : memref<128x256xf32, #tpu.memory_space<vmem>>, vector<128x256xf32>
      %cst_12 = arith.constant dense<0.000000e+00> : vector<128x256xf32>
      %11 = tpu.matmul %9, %10, %cst_12 {dimension_numbers = #tpu.dot_dimension_numbers<[1], [0], [0], [1], [0, 0, 1, 1], [], []>} : vector<128x128xf32>, vector<128x256xf32>, vector<128x256xf32> -> vector<128x256xf32>
      %c0_13 = arith.constant 0 : index
      %c0_14 = arith.constant 0 : index
      %12 = vector.load %arg7[%c0_13, %c0_14] : memref<128x256xf32, #tpu.memory_space<vmem>>, vector<128x256xf32>
      tpu.vector_store %arg7[%c0_13, %c0_14], %11 {strides = array<i32>} : memref<128x256xf32, #tpu.memory_space<vmem>>, vector<128x256xf32>,
    } else {
    }
    %c0 = arith.constant 0 : index
    %c0_1 = arith.constant 0 : index
    %3 = vector.load %arg7[%c0, %c0_1] : memref<128x256xf32, #tpu.memory_space<vmem>>, vector<128x256xf32>
    %c0_2 = arith.constant 0 : index
    %c0_3 = arith.constant 0 : index
    %4 = vector.load %arg3[%c0_2, %c0_3] : memref<128x1024xbf16, #tpu.memory_space<vmem>>, vector<128x1024xbf16>
    %c0_4 = arith.constant 0 : index
    %c0_5 = arith.constant 0 : index
    %5 = vector.load %arg4[%c0_4, %c0_5] : memref<1024x256xbf16, #tpu.memory_space<vmem>>, vector<1024x256xbf16>
    %cst = arith.constant dense<0.000000e+00> : vector<128x256xf32>
    %6 = tpu.matmul %4, %5, %cst {dimension_numbers = #tpu.dot_dimension_numbers<[1], [0], [0], [1], [0, 0, 1, 1], [], []>} : vector<128x1024xbf16>, vector<1024x256xbf16>, vector<128x256xf32> -> vector<128x256xf32>
    %7 = arith.addf %3, %6 : vector<128x256xf32>
    %c0_6 = arith.constant 0 : index
    %c0_7 = arith.constant 0 : index
    %8 = vector.load %arg7[%c0_6, %c0_7] : memref<128x256xf32, #tpu.memory_space<vmem>>, vector<128x256xf32>
    tpu.vector_store %arg7[%c0_6, %c0_7], %7 {strides = array<i32>} : memref<128x256xf32, #tpu.memory_space<vmem>>, vector<128x256xf32>,
    return
  }
  func.func @transform_0(%arg0: i32, %arg1: i32, %arg2: i32) -> (i32, i32) {
    %c0_i32 = arith.constant 0 : i32
    return %arg0, %arg2 : i32, i32
  }
  func.func @transform_1(%arg0: i32, %arg1: i32, %arg2: i32) -> (i32, i32) {
    %c0_i32 = arith.constant 0 : i32
    return %arg2, %arg1 : i32, i32
  }
  func.func @transform_2(%arg0: i32, %arg1: i32, %arg2: i32) -> (i32, i32) {
    %c0_i32 = arith.constant 0 : i32
    %c0_i32_0 = arith.constant 0 : i32
    return %arg0, %c0_i32 : i32, i32
  }
  func.func @transform_3(%arg0: i32, %arg1: i32, %arg2: i32) -> (i32, i32) {
    %c0_i32 = arith.constant 0 : i32
    %c0_i32_0 = arith.constant 0 : i32
    return %c0_i32, %arg1 : i32, i32
  }
  func.func @transform_4(%arg0: i32, %arg1: i32, %arg2: i32) -> (i32, i32) {
    %c0_i32 = arith.constant 0 : i32
    return %arg0, %arg1 : i32, i32
  }
}

</mosaic_0001>

<llo_original>
// kernel: tpu_custom_call.1
$region0: #{tpu_custom_call.1}
  #allocation0 [shape = 'u32[]', space=smem, size = 0x4, offset = 0x4, fixed_abs, tag = 'smem constant byte address 0x4 - core index']
  #allocation1 [shape = 'u32[144,128]{1,0:T(1,128)}', space=vmem, size = 0x12000, scoped, tag = 'internal scratch']
  %s0 = inlined_call_operand.hbm [shape: bf16[128,1024], index: 0, kind: input, shape index: {}]
  %s1 = inlined_call_operand.hbm [shape: bf16[1024,512], index: 1, kind: input, shape index: {}]
  %s2 = inlined_call_operand.hbm [shape: f32[128,128], index: 2, kind: input, shape index: {}]
  %s3 = inlined_call_operand.hbm [shape: f32[128,512], index: 3, kind: input, shape index: {}]
  %s4 = inlined_call_operand.hbm [shape: f32[128,512], index: 4, kind: output, shape index: {}]
  %s5 = sld [smem:[#allocation0]]
  $region69: #{tpu_custom_call.1} parent=0
    _
  %s7 = ssub.s32 1, %s5
  %s8 = scalar_select 0, %s7, %s5
  $region1: #{tpu_custom_call.1} parent=0
    #allocation2 [shape = 'u8[262144]{0}', space=vmem, size = 0x40000, scoped, tag = 'input window, operand 0, single buffered']
    #allocation3 [shape = 's32[2]{0}', space=sflag, size = 0x8, scoped, tag = 'scoped memory for tpu_custom_call.1']
    #allocation4 [shape = 's32[2]{0}', space=sflag, size = 0x8, scoped, tag = 'scoped memory for tpu_custom_call.1']
    #allocation5 [shape = 'u8[1048576]{0}', space=vmem, size = 0x100000, scoped, tag = 'input window, operand 1']
    #allocation6 [shape = 's32[2]{0}', space=sflag, size = 0x8, scoped, tag = 'scoped memory for tpu_custom_call.1']
    #allocation7 [shape = 'u8[65536]{0}', space=vmem, size = 0x10000, scoped, tag = 'input window, operand 2, single buffered']
    #allocation8 [shape = 'u8[262144]{0}', space=vmem, size = 0x40000, scoped, tag = 'input window, operand 3']
    #allocation9 [shape = 's32[2]{0}', space=sflag, size = 0x8, scoped, tag = 'scoped memory for tpu_custom_call.1']
    #allocation10 [shape = 'u8[262144]{0}', space=vmem, size = 0x40000, scoped, tag = 'output window, operand 0']
    %9 = vsyncpa [#allocation3], 0
    %10 = vsyncpa [#allocation6], 0
    %s11 = scalar_lea.sflag [#allocation6], 1
    %12 = vsyncpa %s11, 0
    %13 = vsyncpa [#allocation9], 0
    %s14 = scalar_lea.sflag [#allocation9], 1
    %15 = vsyncpa %s14, 0
    %16 = vsyncpa [#allocation4], 0
    %s17 = scalar_lea.sflag [#allocation4], 1
    %18 = vsyncpa %s17, 0
    loop: start=0, step=1, limit=4
    $region2: #{tpu_custom_call.1} parent=1 // loop_pre_header
      _
    $region3: #{tpu_custom_call.1} parent=1 // loop_header
      %s20 = sphi 0, %s24
      %p21 = scmp.ge.s32.totalorder %s20, 4
      %s27 = sphi 0, %s46
      %s28 = sphi 0, %s42
      %s29 = sphi 0, %s38
      %s30 = sphi 0, %s27
      %s31 = sphi 0, %s28
      %s32 = sphi 0, %s29
      %s33 = sphi 0, %s30
      %s34 = sphi 0, %s31
      %s35 = sphi 0, %s32
      %s51 = sphi 0, %s53
      %s54 = sphi 0, %s51
      %s55 = sphi 0, %s54
      %s71 = sphi 0, %s55
      %s79 = sphi 0, %s81
      %s82 = sphi 0, %s79
      %s83 = sphi 0, %s82
      %s99 = sphi 0, %s83
      %s105 = sphi 0, %s107
      %s108 = sphi 0, %s105
      %s109 = sphi 0, %s108
      %s125 = sphi 0, %s109
      %s131 = sphi 0, %s133
      %s134 = sphi 0, %s131
      %s135 = sphi 0, %s134
      %s151 = sphi 0, %s135
      %s159 = sphi 0, %s161
      %s162 = sphi 0, %s159
      %s163 = sphi 0, %s162
      %s179 = sphi 0, %s163
    $region4: #{tpu_custom_call.1} parent=1 // loop_header_branch
      %23 = sbr.rel (%p21) target = $region8
    $region5: #{tpu_custom_call.1} parent=1 // loop_body
      %s25 = ssub.s32 %s20, 1
      %s26 = ssub.s32 %s20, 2
      %s36 = sadd.s32 1, %s29
      %p37 = scmp.ge.s32.totalorder %s36, 1
      %s38 = scalar_select %p37, 0, %s36
      %s39 = sadd.s32 1, %s28
      %s40 = scalar_select %p37, %s39, %s28
      %p41 = scmp.ge.s32.totalorder %s40, 2
      %s42 = scalar_select %p41, 0, %s40
      %s43 = sadd.s32 1, %s27
      %s44 = scalar_select %p41, %s43, %s27
      %p45 = scmp.ge.s32.totalorder %s44, 1
      %s46 = scalar_select %p45, 0, %s44
      %s47 = ssub.s32 %s27, %s46
      %s48 = ssub.s32 %s29, %s38
      %s49 = sor.u32 %s47, %s48
      %p50 = scmp.eq.s32.totalorder %s49, 0
      %s52 = sadd.s32 %s51, 1
      %s53 = scalar_select %p50, %s51, %s52
      %p56 = pneg %p50
      %p57 = scmp.eq.s32.totalorder %s20, 1
      %p58 = por %p56, %p57
      %p59 = scmp.ne.s32.totalorder %s51, %s54
      %p60 = scmp.eq.s32.totalorder %s20, 0
      %p61 = por %p59, %p60
      %p62 = scmp.ne.s32.totalorder %s51, %s54
      %p63 = scmp.eq.s32.totalorder %s25, 1
      %p64 = por %p62, %p63
      %p65 = scmp.ne.s32.totalorder %s54, %s55
      %p66 = scmp.eq.s32.totalorder %s25, 0
      %p67 = por %p65, %p66
      %p68 = scmp.ne.s32.totalorder %s54, %s55
      %p69 = scmp.eq.s32.totalorder %s26, 1
      %p70 = por %p68, %p69
      %p72 = scmp.ne.s32.totalorder %s55, %s71
      %p73 = scmp.eq.s32.totalorder %s26, 0
      %p74 = por %p72, %p73
      %s75 = ssub.s32 %s29, %s38
      %s76 = ssub.s32 %s28, %s42
      %s77 = sor.u32 %s75, %s76
      %p78 = scmp.eq.s32.totalorder %s77, 0
      %s80 = sadd.s32 %s79, 1
      %s81 = scalar_select %p78, %s79, %s80
      %p84 = pneg %p78
      %p85 = scmp.eq.s32.totalorder %s20, 1
      %p86 = por %p84, %p85
      %p87 = scmp.ne.s32.totalorder %s79, %s82
      %p88 = scmp.eq.s32.totalorder %s20, 0
      %p89 = por %p87, %p88
      %p90 = scmp.ne.s32.totalorder %s79, %s82
      %p91 = scmp.eq.s32.totalorder %s25, 1
      %p92 = por %p90, %p91
      %p93 = scmp.ne.s32.totalorder %s82, %s83
      %p94 = scmp.eq.s32.totalorder %s25, 0
      %p95 = por %p93, %p94
      %p96 = scmp.ne.s32.totalorder %s82, %s83
      %p97 = scmp.eq.s32.totalorder %s26, 1
      %p98 = por %p96, %p97
      %p100 = scmp.ne.s32.totalorder %s83, %s99
      %p101 = scmp.eq.s32.totalorder %s26, 0
      %p102 = por %p100, %p101
      %s103 = ssub.s32 %s27, %s46
      %p104 = scmp.eq.s32.totalorder %s103, 0
      %s106 = sadd.s32 %s105, 1
      %s107 = scalar_select %p104, %s105, %s106
      %p110 = pneg %p104
      %p111 = scmp.eq.s32.totalorder %s20, 1
      %p112 = por %p110, %p111
      %p113 = scmp.ne.s32.totalorder %s105, %s108
      %p114 = scmp.eq.s32.totalorder %s20, 0
      %p115 = por %p113, %p114
      %p116 = scmp.ne.s32.totalorder %s105, %s108
      %p117 = scmp.eq.s32.totalorder %s25, 1
      %p118 = por %p116, %p117
      %p119 = scmp.ne.s32.totalorder %s108, %s109
      %p120 = scmp.eq.s32.totalorder %s25, 0
      %p121 = por %p119, %p120
      %p122 = scmp.ne.s32.totalorder %s108, %s109
      %p123 = scmp.eq.s32.totalorder %s26, 1
      %p124 = por %p122, %p123
      %p126 = scmp.ne.s32.totalorder %s109, %s125
      %p127 = scmp.eq.s32.totalorder %s26, 0
      %p128 = por %p126, %p127
      %s129 = ssub.s32 %s28, %s42
      %p130 = scmp.eq.s32.totalorder %s129, 0
      %s132 = sadd.s32 %s131, 1
      %s133 = scalar_select %p130, %s131, %s132
      %p136 = pneg %p130
      %p137 = scmp.eq.s32.totalorder %s20, 1
      %p138 = por %p136, %p137
      %p139 = scmp.ne.s32.totalorder %s131, %s134
      %p140 = scmp.eq.s32.totalorder %s20, 0
      %p141 = por %p139, %p140
      %p142 = scmp.ne.s32.totalorder %s131, %s134
      %p143 = scmp.eq.s32.totalorder %s25, 1
      %p144 = por %p142, %p143
      %p145 = scmp.ne.s32.totalorder %s134, %s135
      %p146 = scmp.eq.s32.totalorder %s25, 0
      %p147 = por %p145, %p146
      %p148 = scmp.ne.s32.totalorder %s134, %s135
      %p149 = scmp.eq.s32.totalorder %s26, 1
      %p150 = por %p148, %p149
      %p152 = scmp.ne.s32.totalorder %s135, %s151
      %p153 = scmp.eq.s32.totalorder %s26, 0
      %p154 = por %p152, %p153
      %s155 = ssub.s32 %s27, %s46
      %s156 = ssub.s32 %s28, %s42
      %s157 = sor.u32 %s155, %s156
      %p158 = scmp.eq.s32.totalorder %s157, 0
      %s160 = sadd.s32 %s159, 1
      %s161 = scalar_select %p158, %s159, %s160
      %p164 = pneg %p158
      %p165 = scmp.eq.s32.totalorder %s20, 1
      %p166 = por %p164, %p165
      %p167 = scmp.ne.s32.totalorder %s159, %s162
      %p168 = scmp.eq.s32.totalorder %s20, 0
      %p169 = por %p167, %p168
      %p170 = scmp.ne.s32.totalorder %s159, %s162
      %p171 = scmp.eq.s32.totalorder %s25, 1
      %p172 = por %p170, %p171
      %p173 = scmp.ne.s32.totalorder %s162, %s163
      %p174 = scmp.eq.s32.totalorder %s25, 0
      %p175 = por %p173, %p174
      %p176 = scmp.ne.s32.totalorder %s162, %s163
      %p177 = scmp.eq.s32.totalorder %s26, 1
      %p178 = por %p176, %p177
      %p180 = scmp.ne.s32.totalorder %s163, %s179
      %p181 = scmp.eq.s32.totalorder %s26, 0
      %p182 = por %p180, %p181
      %p183 = scmp.le.s32.totalorder 1, %s20
      %p184 = scmp.lt.s32.totalorder %s20, 3
      %p185 = pnand %p183, %p184
      %p186 = pneg %p185
      // Predicated region
      $region9: #{tpu_custom_call.1} parent=5 // pred_check
        _
      $region10: #{tpu_custom_call.1} parent=5 // pred_check_branch
        %188 = sbr.rel (%p185) target = $region12
      $region11: #{tpu_custom_call.1} parent=5 // pred_region
        %s189 = ssub.s32 %s20, 1
        // Predicated region
        $region13: #{tpu_custom_call.1} parent=11 // pred_check
          %p190 = pneg %p67
        $region14: #{tpu_custom_call.1} parent=11 // pred_check_branch
          %192 = sbr.rel (%p190) target = $region16
        $region15: #{tpu_custom_call.1} parent=11 // pred_region
          %s193 = smul.u32 16, %s30
          %s194 = smul.u32 8, %s32
          %s196 = ssub.s32 8192, 8192
          %197 = vsyncadd [#allocation3], %s196
          %s198 = smul.addr %s193, 8
          %s199 = sadd.s32 %s194, %s198
          %s200 = smul.addr %s199, 64
          %s201 = scalar_lea.hbm %s0, %s200
          %s202 = sshll.u32 [#allocation2], 4
          %s203 = int_to_ptr.vmem [resolvable:$true] %s202
          %208 = dma.hbm_to_vmem [thread:$0]  %s201, 8192, %s203, [#allocation3], 512, 512, 32
        $region16: #{tpu_custom_call.1} parent=11 // pred_fallthru
          _
        // Predicated region
        $region17: #{tpu_custom_call.1} parent=11 // pred_check
          %p209 = pneg %p121
        $region18: #{tpu_custom_call.1} parent=11 // pred_check_branch
          %211 = sbr.rel (%p209) target = $region20
        $region19: #{tpu_custom_call.1} parent=11 // pred_region
          %s212 = smul.u32 16, %s30
          %s214 = ssub.s32 2048, 2048
          %215 = vsyncadd [#allocation6], %s214
          %s216 = smul.addr %s212, 128
          %s217 = scalar_lea.hbm %s2, %s216
          %s218 = sshll.u32 [#allocation7], 4
          %s219 = int_to_ptr.vmem [resolvable:$true] %s218
          %224 = dma.hbm_to_vmem [thread:$0]  %s217, 2048, %s219, [#allocation6], 128, 128, 8
        $region20: #{tpu_custom_call.1} parent=11 // pred_fallthru
          _
      $region12: #{tpu_custom_call.1} parent=5 // pred_fallthru
        _
      %p225 = scmp.lt.s32.totalorder %s20, 2
      // Predicated region
      $region21: #{tpu_custom_call.1} parent=5 // pred_check
        %p226 = pneg %p225
      $region22: #{tpu_custom_call.1} parent=5 // pred_check_branch
        %228 = sbr.rel (%p226) target = $region24
      $region23: #{tpu_custom_call.1} parent=5 // pred_region
        // Predicated region
        $region25: #{tpu_custom_call.1} parent=23 // pred_check
          %p229 = pneg %p89
        $region26: #{tpu_custom_call.1} parent=23 // pred_check_branch
          %231 = sbr.rel (%p229) target = $region28
        $region27: #{tpu_custom_call.1} parent=23 // pred_region
          %s232 = sand.u32 %s20, 1
          %s233 = scalar_lea.sflag [#allocation6], %s232
          %s234 = sand.u32 %s79, 1
          %s235 = smul.addr %s234, 1024
          %s236 = scalar_lea.vmem [#allocation5], %s235
          %s237 = smul.u32 128, %s29
          %s238 = smul.u32 2, %s28
          %s240 = ssub.s32 16384, 16384
          %241 = vsyncadd %s233, %s240
          %s242 = smul.addr %s237, 4
          %s243 = sadd.s32 %s238, %s242
          %s244 = smul.addr %s243, 64
          %s245 = scalar_lea.hbm %s1, %s244
          %s246 = sshll.u32 %s236, 4
          %s247 = int_to_ptr.vmem [resolvable:$true] %s246
          %252 = dma.hbm_to_vmem [thread:$0]  %s245, 16384, %s247, %s233, 256, 128, 8
        $region28: #{tpu_custom_call.1} parent=23 // pred_fallthru
          _
        // Predicated region
        $region29: #{tpu_custom_call.1} parent=23 // pred_check
          %p253 = pneg %p141
        $region30: #{tpu_custom_call.1} parent=23 // pred_check_branch
          %255 = sbr.rel (%p253) target = $region32
        $region31: #{tpu_custom_call.1} parent=23 // pred_region
          %s256 = sand.u32 %s131, 1
          %s257 = scalar_lea.sflag [#allocation9], %s256
          %s258 = sand.u32 %s131, 1
          %s259 = smul.addr %s258, 256
          %s260 = scalar_lea.vmem [#allocation8], %s259
          %s261 = smul.u32 2, %s28
          %s263 = ssub.s32 4096, 4096
          %264 = vsyncadd %s257, %s263
          %s265 = smul.addr %s261, 128
          %s266 = scalar_lea.hbm %s3, %s265
          %s267 = sshll.u32 %s260, 4
          %s268 = int_to_ptr.vmem [resolvable:$true] %s267
          %273 = dma.hbm_to_vmem [thread:$0]  %s266, 4096, %s268, %s257, 512, 256, 16
        $region32: #{tpu_custom_call.1} parent=23 // pred_fallthru
          _
      $region24: #{tpu_custom_call.1} parent=5 // pred_fallthru
        _
      %p274 = scmp.le.s32.totalorder 1, %s20
      %p275 = scmp.lt.s32.totalorder %s20, 3
      %p276 = pnand %p274, %p275
      %p277 = pneg %p276
      // Predicated region
      $region33: #{tpu_custom_call.1} parent=5 // pred_check
        _
      $region34: #{tpu_custom_call.1} parent=5 // pred_check_branch
        %279 = sbr.rel (%p276) target = $region36
      $region35: #{tpu_custom_call.1} parent=5 // pred_region
        %s280 = ssub.s32 %s20, 1
        // Predicated region
        $region37: #{tpu_custom_call.1} parent=35 // pred_check
          %p281 = pneg %p67
        $region38: #{tpu_custom_call.1} parent=35 // pred_check_branch
          %283 = sbr.rel (%p281) target = $region40
        $region39: #{tpu_custom_call.1} parent=35 // pred_region
          %284 = dma.done [#allocation3], 8192
        $region40: #{tpu_custom_call.1} parent=35 // pred_fallthru
          _
        %s285 = sand.u32 %s25, 1
        %s286 = scalar_lea.sflag [#allocation6], %s285
        %s287 = sand.u32 %s82, 1
        %s288 = smul.addr %s287, 1024
        %s289 = scalar_lea.vmem [#allocation5], %s288
        // Predicated region
        $region41: #{tpu_custom_call.1} parent=35 // pred_check
          %p290 = pneg %p95
        $region42: #{tpu_custom_call.1} parent=35 // pred_check_branch
          %292 = sbr.rel (%p290) target = $region44
        $region43: #{tpu_custom_call.1} parent=35 // pred_region
          %293 = dma.done %s286, 16384
        $region44: #{tpu_custom_call.1} parent=35 // pred_fallthru
          _
        // Predicated region
        $region45: #{tpu_custom_call.1} parent=35 // pred_check
          %p294 = pneg %p121
        $region46: #{tpu_custom_call.1} parent=35 // pred_check_branch
          %296 = sbr.rel (%p294) target = $region48
        $region47: #{tpu_custom_call.1} parent=35 // pred_region
          %297 = dma.done [#allocation6], 2048
        $region48: #{tpu_custom_call.1} parent=35 // pred_fallthru
          _
        %s298 = sand.u32 %s134, 1
        %s299 = scalar_lea.sflag [#allocation9], %s298
        %s300 = sand.u32 %s134, 1
        %s301 = smul.addr %s300, 256
        %s302 = scalar_lea.vmem [#allocation8], %s301
        // Predicated region
        $region49: #{tpu_custom_call.1} parent=35 // pred_check
          %p303 = pneg %p147
        $region50: #{tpu_custom_call.1} parent=35 // pred_check_branch
          %305 = sbr.rel (%p303) target = $region52
        $region51: #{tpu_custom_call.1} parent=35 // pred_region
          %306 = dma.done %s299, 4096
        $region52: #{tpu_custom_call.1} parent=35 // pred_fallthru
          _
        %p307 = pneg %p67
        %p308 = pneg %p64
        %s309 = sand.u32 %s25, 1
        %s310 = scalar_lea.sflag [#allocation6], %s309
        %s311 = sand.u32 %s82, 1
        %s312 = smul.addr %s311, 1024
        %s313 = scalar_lea.vmem [#allocation5], %s312
        %p314 = pneg %p95
        %p315 = pneg %p92
        %p316 = pneg %p121
        %p317 = pneg %p118
        %s318 = sand.u32 %s134, 1
        %s319 = scalar_lea.sflag [#allocation9], %s318
        %s320 = sand.u32 %s134, 1
        %s321 = smul.addr %s320, 256
        %s322 = scalar_lea.vmem [#allocation8], %s321
        %p323 = pneg %p147
        %p324 = pneg %p144
        %p325 = pneg %p175
        %p326 = pneg %p172
        %s327 = sand.u32 %s162, 1
        %s328 = scalar_lea.sflag [#allocation4], %s327
        %s329 = sand.u32 %s162, 1
        %s330 = smul.addr %s329, 256
        %s331 = scalar_lea.vmem [#allocation10], %s330
        %s332 = smul.u32 16, %s30
        %s333 = smul.u32 8, %s32
        %s334 = smul.u32 128, %s32
        %s335 = smul.u32 2, %s31
        %s336 = smul.u32 16, %s30
        %s337 = smul.u32 2, %s31
        %s338 = smul.u32 16, %s30
        %s339 = smul.u32 2, %s31
        %p340 = scmp.eq.s32.totalorder %s32, 0
        // Predicated region
        $region53: #{tpu_custom_call.1} parent=35 // pred_check
          %p341 = pneg %p340
        $region54: #{tpu_custom_call.1} parent=35 // pred_check_branch
          %343 = sbr.rel (%p341) target = $region56
        $region55: #{tpu_custom_call.1} parent=35 // pred_region
          %v344 = vld [vmem:[#allocation7] sm:$0xff]
          %v345 = vld [vmem:[#allocation7 + $0x8] sm:$0xff]
          %v346 = vld [vmem:[#allocation7 + $0x10] sm:$0xff]
          %v347 = vld [vmem:[#allocation7 + $0x18] sm:$0xff]
          %v348 = vld [vmem:[#allocation7 + $0x20] sm:$0xff]
          %v349 = vld [vmem:[#allocation7 + $0x28] sm:$0xff]
          %v350 = vld [vmem:[#allocation7 + $0x30] sm:$0xff]
          %v351 = vld [vmem:[#allocation7 + $0x38] sm:$0xff]
          %v352 = vld [vmem:[#allocation7 + $0x40] sm:$0xff]
          %v353 = vld [vmem:[#allocation7 + $0x48] sm:$0xff]
          %v354 = vld [vmem:[#allocation7 + $0x50] sm:$0xff]
          %v355 = vld [vmem:[#allocation7 + $0x58] sm:$0xff]
          %v356 = vld [vmem:[#allocation7 + $0x60] sm:$0xff]
          %v357 = vld [vmem:[#allocation7 + $0x68] sm:$0xff]
          %v358 = vld [vmem:[#allocation7 + $0x70] sm:$0xff]
          %v359 = vld [vmem:[#allocation7 + $0x78] sm:$0xff]
          %v360 = vld [vmem:[%s302] sm:$0xff]
          %v361 = vld [vmem:[%s302 + $0x8] sm:$0xff]
          %v362 = vld [vmem:[%s302 + $0x10] sm:$0xff]
          %v363 = vld [vmem:[%s302 + $0x18] sm:$0xff]
          %v364 = vld [vmem:[%s302 + $0x20] sm:$0xff]
          %v365 = vld [vmem:[%s302 + $0x28] sm:$0xff]
          %v366 = vld [vmem:[%s302 + $0x30] sm:$0xff]
          %v367 = vld [vmem:[%s302 + $0x38] sm:$0xff]
          %v368 = vld [vmem:[%s302 + $0x40] sm:$0xff]
          %v369 = vld [vmem:[%s302 + $0x48] sm:$0xff]
          %v370 = vld [vmem:[%s302 + $0x50] sm:$0xff]
          %v371 = vld [vmem:[%s302 + $0x58] sm:$0xff]
          %v372 = vld [vmem:[%s302 + $0x60] sm:$0xff]
          %v373 = vld [vmem:[%s302 + $0x68] sm:$0xff]
          %v374 = vld [vmem:[%s302 + $0x70] sm:$0xff]
          %v375 = vld [vmem:[%s302 + $0x78] sm:$0xff]
          %v376 = vld [vmem:[%s302 + $0x80] sm:$0xff]
          %v377 = vld [vmem:[%s302 + $0x88] sm:$0xff]
          %v378 = vld [vmem:[%s302 + $0x90] sm:$0xff]
          %v379 = vld [vmem:[%s302 + $0x98] sm:$0xff]
          %v380 = vld [vmem:[%s302 + $0xa0] sm:$0xff]
          %v381 = vld [vmem:[%s302 + $0xa8] sm:$0xff]
          %v382 = vld [vmem:[%s302 + $0xb0] sm:$0xff]
          %v383 = vld [vmem:[%s302 + $0xb8] sm:$0xff]
          %v384 = vld [vmem:[%s302 + $0xc0] sm:$0xff]
          %v385 = vld [vmem:[%s302 + $0xc8] sm:$0xff]
          %v386 = vld [vmem:[%s302 + $0xd0] sm:$0xff]
          %v387 = vld [vmem:[%s302 + $0xd8] sm:$0xff]
          %v388 = vld [vmem:[%s302 + $0xe0] sm:$0xff]
          %v389 = vld [vmem:[%s302 + $0xe8] sm:$0xff]
          %v390 = vld [vmem:[%s302 + $0xf0] sm:$0xff]
          %v391 = vld [vmem:[%s302 + $0xf8] sm:$0xff]
          %392 = vmatprep.subr.mxu0 %v391
          %393 = vmatpush1.msra.mxu0 %v390
          %394 = vmatprep.subr.mxu0 %v389
          %395 = vmatpush1.msra.mxu0 %v388
          %396 = vmatprep.subr.mxu0 %v387
          %397 = vmatpush1.msra.mxu0 %v386
          %398 = vmatprep.subr.mxu0 %v385
          %399 = vmatpush1.msra.mxu0 %v384
          %400 = vmatprep.subr.mxu0 %v383
          %401 = vmatpush1.msra.mxu0 %v382
          %402 = vmatprep.subr.mxu0 %v381
          %403 = vmatpush1.msra.mxu0 %v380
          %404 = vmatprep.subr.mxu0 %v379
          %405 = vmatpush1.msra.mxu0 %v378
          %406 = vmatprep.subr.mxu0 %v377
          %407 = vmatpush1.msra.mxu0 %v376
          %408 = vmatprep.subr.mxu0 %v375
          %409 = vmatpush1.msra.mxu0 %v374
          %410 = vmatprep.subr.mxu0 %v373
          %411 = vmatpush1.msra.mxu0 %v372
          %412 = vmatprep.subr.mxu0 %v371
          %413 = vmatpush1.msra.mxu0 %v370
          %414 = vmatprep.subr.mxu0 %v369
          %415 = vmatpush1.msra.mxu0 %v368
          %416 = vmatprep.subr.mxu0 %v367
          %417 = vmatpush1.msra.mxu0 %v366
          %418 = vmatprep.subr.mxu0 %v365
          %419 = vmatpush1.msra.mxu0 %v364
          %420 = vmatprep.subr.mxu0 %v363
          %421 = vmatpush1.msra.mxu0 %v362
          %422 = vmatprep.subr.mxu0 %v361
          %423 = vmatpush1.msra.mxu0 %v360
          %424 = vmatprep.subr.mxu0 0.0
          %425 = vmatpush2.msra.mxu0 0.0
          %426 = vmatprep.subr.mxu0 0.0
          %427 = vmatpush2.msra.mxu0 0.0
          %428 = vmatprep.subr.mxu0 0.0
          %429 = vmatpush2.msra.mxu0 0.0
          %430 = vmatprep.subr.mxu0 0.0
          %431 = vmatpush2.msra.mxu0 0.0
          %432 = vmatprep.subr.mxu0 0.0
          %433 = vmatpush2.msra.mxu0 0.0
          %434 = vmatprep.subr.mxu0 0.0
          %435 = vmatpush2.msra.mxu0 0.0
          %436 = vmatprep.subr.mxu0 0.0
          %437 = vmatpush2.msra.mxu0 0.0
          %438 = vmatprep.subr.mxu0 0.0
          %439 = vmatpush2.msra.mxu0 0.0
          %440 = vmatprep.subr.mxu0 0.0
          %441 = vmatpush2.msra.mxu0 0.0
          %442 = vmatprep.subr.mxu0 0.0
          %443 = vmatpush2.msra.mxu0 0.0
          %444 = vmatprep.subr.mxu0 0.0
          %445 = vmatpush2.msra.mxu0 0.0
          %446 = vmatprep.subr.mxu0 0.0
          %447 = vmatpush2.msra.mxu0 0.0
          %448 = vmatprep.subr.mxu0 0.0
          %449 = vmatpush2.msra.mxu0 0.0
          %450 = vmatprep.subr.mxu0 0.0
          %451 = vmatpush2.msra.mxu0 0.0
          %452 = vmatprep.subr.mxu0 0.0
          %453 = vmatpush2.msra.mxu0 0.0
          %454 = vmatprep.subr.mxu0 0.0
          %455 = vmatpush2.msra.mxu0 0.0
          %456 = vmatprep.mubr.f32.mxu0 0.0
          %457 = vmatmul.mubr.f32.gmra.mxu0 %v344
          %v458 = vpop.f32.mrf.mxu0
          %v459 = vadd.f32 0.0, %v458
          %v460 = vpop.f32.mrf.mxu0
          %v461 = vadd.f32 0.0, %v460
          %462 = vmatprep.mubr.f32.mxu0 0.0
          %463 = vmatmul.mubr.f32.gmra.mxu0 %v345
          %v464 = vpop.f32.mrf.mxu0
          %v465 = vadd.f32 0.0, %v464
          %v466 = vpop.f32.mrf.mxu0
          %v467 = vadd.f32 0.0, %v466
          %468 = vmatprep.mubr.f32.mxu0 0.0
          %469 = vmatmul.mubr.f32.gmra.mxu0 %v346
          %v470 = vpop.f32.mrf.mxu0
          %v471 = vadd.f32 0.0, %v470
          %v472 = vpop.f32.mrf.mxu0
          %v473 = vadd.f32 0.0, %v472
          %474 = vmatprep.mubr.f32.mxu0 0.0
          %475 = vmatmul.mubr.f32.gmra.mxu0 %v347
          %v476 = vpop.f32.mrf.mxu0
          %v477 = vadd.f32 0.0, %v476
          %v478 = vpop.f32.mrf.mxu0
          %v479 = vadd.f32 0.0, %v478
          %480 = vmatprep.mubr.f32.mxu0 0.0
          %481 = vmatmul.mubr.f32.gmra.mxu0 %v348
          %v482 = vpop.f32.mrf.mxu0
          %v483 = vadd.f32 0.0, %v482
          %v484 = vpop.f32.mrf.mxu0
          %v485 = vadd.f32 0.0, %v484
          %486 = vmatprep.mubr.f32.mxu0 0.0
          %487 = vmatmul.mubr.f32.gmra.mxu0 %v349
          %v488 = vpop.f32.mrf.mxu0
          %v489 = vadd.f32 0.0, %v488
          %v490 = vpop.f32.mrf.mxu0
          %v491 = vadd.f32 0.0, %v490
          %492 = vmatprep.mubr.f32.mxu0 0.0
          %493 = vmatmul.mubr.f32.gmra.mxu0 %v350
          %v494 = vpop.f32.mrf.mxu0
          %v495 = vadd.f32 0.0, %v494
          %v496 = vpop.f32.mrf.mxu0
          %v497 = vadd.f32 0.0, %v496
          %498 = vmatprep.mubr.f32.mxu0 0.0
          %499 = vmatmul.mubr.f32.gmra.mxu0 %v351
          %v500 = vpop.f32.mrf.mxu0
          %v501 = vadd.f32 0.0, %v500
          %v502 = vpop.f32.mrf.mxu0
          %v503 = vadd.f32 0.0, %v502
          %504 = vmatprep.mubr.f32.mxu0 0.0
          %505 = vmatmul.mubr.f32.gmra.mxu0 %v352
          %v506 = vpop.f32.mrf.mxu0
          %v507 = vadd.f32 0.0, %v506
          %v508 = vpop.f32.mrf.mxu0
          %v509 = vadd.f32 0.0, %v508
          %510 = vmatprep.mubr.f32.mxu0 0.0
          %511 = vmatmul.mubr.f32.gmra.mxu0 %v353
          %v512 = vpop.f32.mrf.mxu0
          %v513 = vadd.f32 0.0, %v512
          %v514 = vpop.f32.mrf.mxu0
          %v515 = vadd.f32 0.0, %v514
          %516 = vmatprep.mubr.f32.mxu0 0.0
          %517 = vmatmul.mubr.f32.gmra.mxu0 %v354
          %v518 = vpop.f32.mrf.mxu0
          %v519 = vadd.f32 0.0, %v518
          %v520 = vpop.f32.mrf.mxu0
          %v521 = vadd.f32 0.0, %v520
          %522 = vmatprep.mubr.f32.mxu0 0.0
          %523 = vmatmul.mubr.f32.gmra.mxu0 %v355
          %v524 = vpop.f32.mrf.mxu0
          %v525 = vadd.f32 0.0, %v524
          %v526 = vpop.f32.mrf.mxu0
          %v527 = vadd.f32 0.0, %v526
          %528 = vmatprep.mubr.f32.mxu0 0.0
          %529 = vmatmul.mubr.f32.gmra.mxu0 %v356
          %v530 = vpop.f32.mrf.mxu0
          %v531 = vadd.f32 0.0, %v530
          %v532 = vpop.f32.mrf.mxu0
          %v533 = vadd.f32 0.0, %v532
          %534 = vmatprep.mubr.f32.mxu0 0.0
          %535 = vmatmul.mubr.f32.gmra.mxu0 %v357
          %v536 = vpop.f32.mrf.mxu0
          %v537 = vadd.f32 0.0, %v536
          %v538 = vpop.f32.mrf.mxu0
          %v539 = vadd.f32 0.0, %v538
          %540 = vmatprep.mubr.f32.mxu0 0.0
          %541 = vmatmul.mubr.f32.gmra.mxu0 %v358
          %v542 = vpop.f32.mrf.mxu0
          %v543 = vadd.f32 0.0, %v542
          %v544 = vpop.f32.mrf.mxu0
          %v545 = vadd.f32 0.0, %v544
          %546 = vmatprep.mubr.f32.mxu0 0.0
          %547 = vmatmul.mubr.f32.gmra.mxu0 %v359
          %v548 = vpop.f32.mrf.mxu0
          %v549 = vadd.f32 0.0, %v548
          %v550 = vpop.f32.mrf.mxu0
          %v551 = vadd.f32 0.0, %v550
          %552 = vdwg.mxu0
          %553 = vst [vmem:[%s331] sm:$0xff] %v459
          %554 = vst [vmem:[%s331 + $0x8] sm:$0xff] %v461
          %555 = vst [vmem:[%s331 + $0x10] sm:$0xff] %v465
          %556 = vst [vmem:[%s331 + $0x18] sm:$0xff] %v467
          %557 = vst [vmem:[%s331 + $0x20] sm:$0xff] %v471
          %558 = vst [vmem:[%s331 + $0x28] sm:$0xff] %v473
          %559 = vst [vmem:[%s331 + $0x30] sm:$0xff] %v477
          %560 = vst [vmem:[%s331 + $0x38] sm:$0xff] %v479
          %561 = vst [vmem:[%s331 + $0x40] sm:$0xff] %v483
          %562 = vst [vmem:[%s331 + $0x48] sm:$0xff] %v485
          %563 = vst [vmem:[%s331 + $0x50] sm:$0xff] %v489
          %564 = vst [vmem:[%s331 + $0x58] sm:$0xff] %v491
          %565 = vst [vmem:[%s331 + $0x60] sm:$0xff] %v495
          %566 = vst [vmem:[%s331 + $0x68] sm:$0xff] %v497
          %567 = vst [vmem:[%s331 + $0x70] sm:$0xff] %v501
          %568 = vst [vmem:[%s331 + $0x78] sm:$0xff] %v503
          %569 = vst [vmem:[%s331 + $0x80] sm:$0xff] %v507
          %570 = vst [vmem:[%s331 + $0x88] sm:$0xff] %v509
          %571 = vst [vmem:[%s331 + $0x90] sm:$0xff] %v513
          %572 = vst [vmem:[%s331 + $0x98] sm:$0xff] %v515
          %573 = vst [vmem:[%s331 + $0xa0] sm:$0xff] %v519
          %574 = vst [vmem:[%s331 + $0xa8] sm:$0xff] %v521
          %575 = vst [vmem:[%s331 + $0xb0] sm:$0xff] %v525
          %576 = vst [vmem:[%s331 + $0xb8] sm:$0xff] %v527
          %577 = vst [vmem:[%s331 + $0xc0] sm:$0xff] %v531
          %578 = vst [vmem:[%s331 + $0xc8] sm:$0xff] %v533
          %579 = vst [vmem:[%s331 + $0xd0] sm:$0xff] %v537
          %580 = vst [vmem:[%s331 + $0xd8] sm:$0xff] %v539
          %581 = vst [vmem:[%s331 + $0xe0] sm:$0xff] %v543
          %582 = vst [vmem:[%s331 + $0xe8] sm:$0xff] %v545
          %583 = vst [vmem:[%s331 + $0xf0] sm:$0xff] %v549
          %584 = vst [vmem:[%s331 + $0xf8] sm:$0xff] %v551
        $region56: #{tpu_custom_call.1} parent=35 // pred_fallthru
          _
        %v585 = vld [vmem:[%s331] sm:$0xff]
        %v586 = vld [vmem:[%s331 + $0x8] sm:$0xff]
        %v587 = vld [vmem:[%s331 + $0x10] sm:$0xff]
        %v588 = vld [vmem:[%s331 + $0x18] sm:$0xff]
        %v589 = vld [vmem:[%s331 + $0x20] sm:$0xff]
        %v590 = vld [vmem:[%s331 + $0x28] sm:$0xff]
        %v591 = vld [vmem:[%s331 + $0x30] sm:$0xff]
        %v592 = vld [vmem:[%s331 + $0x38] sm:$0xff]
        %v593 = vld [vmem:[%s331 + $0x40] sm:$0xff]
        %v594 = vld [vmem:[%s331 + $0x48] sm:$0xff]
        %v595 = vld [vmem:[%s331 + $0x50] sm:$0xff]
        %v596 = vld [vmem:[%s331 + $0x58] sm:$0xff]
        %v597 = vld [vmem:[%s331 + $0x60] sm:$0xff]
        %v598 = vld [vmem:[%s331 + $0x68] sm:$0xff]
        %v599 = vld [vmem:[%s331 + $0x70] sm:$0xff]
        %v600 = vld [vmem:[%s331 + $0x78] sm:$0xff]
        %v601 = vld [vmem:[%s331 + $0x80] sm:$0xff]
        %v602 = vld [vmem:[%s331 + $0x88] sm:$0xff]
        %v603 = vld [vmem:[%s331 + $0x90] sm:$0xff]
        %v604 = vld [vmem:[%s331 + $0x98] sm:$0xff]
        %v605 = vld [vmem:[%s331 + $0xa0] sm:$0xff]
        %v606 = vld [vmem:[%s331 + $0xa8] sm:$0xff]
        %v607 = vld [vmem:[%s331 + $0xb0] sm:$0xff]
        %v608 = vld [vmem:[%s331 + $0xb8] sm:$0xff]
        %v609 = vld [vmem:[%s331 + $0xc0] sm:$0xff]
        %v610 = vld [vmem:[%s331 + $0xc8] sm:$0xff]
        %v611 = vld [vmem:[%s331 + $0xd0] sm:$0xff]
        %v612 = vld [vmem:[%s331 + $0xd8] sm:$0xff]
        %v613 = vld [vmem:[%s331 + $0xe0] sm:$0xff]
        %v614 = vld [vmem:[%s331 + $0xe8] sm:$0xff]
        %v615 = vld [vmem:[%s331 + $0xf0] sm:$0xff]
        %v616 = vld [vmem:[%s331 + $0xf8] sm:$0xff]
        %v617 = vld [vmem:[#allocation2] sm:$0xff]
        %v618 = vld [vmem:[#allocation2 + $0x8] sm:$0xff]
        %v619 = vld [vmem:[#allocation2 + $0x10] sm:$0xff]
        %v620 = vld [vmem:[#allocation2 + $0x18] sm:$0xff]
        %v621 = vld [vmem:[#allocation2 + $0x20] sm:$0xff]
        %v622 = vld [vmem:[#allocation2 + $0x28] sm:$0xff]
        %v623 = vld [vmem:[#allocation2 + $0x30] sm:$0xff]
        %v624 = vld [vmem:[#allocation2 + $0x38] sm:$0xff]
        %v625 = vld [vmem:[#allocation2 + $0x40] sm:$0xff]
        %v626 = vld [vmem:[#allocation2 + $0x48] sm:$0xff]
        %v627 = vld [vmem:[#allocation2 + $0x50] sm:$0xff]
        %v628 = vld [vmem:[#allocation2 + $0x58] sm:$0xff]
        %v629 = vld [vmem:[#allocation2 + $0x60] sm:$0xff]
        %v630 = vld [vmem:[#allocation2 + $0x68] sm:$0xff]
        %v631 = vld [vmem:[#allocation2 + $0x70] sm:$0xff]
        %v632 = vld [vmem:[#allocation2 + $0x78] sm:$0xff]
        %v633 = vld [vmem:[#allocation2 + $0x80] sm:$0xff]
        %v634 = vld [vmem:[#allocation2 + $0x88] sm:$0xff]
        %v635 = vld [vmem:[#allocation2 + $0x90] sm:$0xff]
        %v636 = vld [vmem:[#allocation2 + $0x98] sm:$0xff]
        %v637 = vld [vmem:[#allocation2 + $0xa0] sm:$0xff]
        %v638 = vld [vmem:[#allocation2 + $0xa8] sm:$0xff]
        %v639 = vld [vmem:[#allocation2 + $0xb0] sm:$0xff]
        %v640 = vld [vmem:[#allocation2 + $0xb8] sm:$0xff]
        %v641 = vld [vmem:[#allocation2 + $0xc0] sm:$0xff]
        %v642 = vld [vmem:[#allocation2 + $0xc8] sm:$0xff]
        %v643 = vld [vmem:[#allocation2 + $0xd0] sm:$0xff]
        %v644 = vld [vmem:[#allocation2 + $0xd8] sm:$0xff]
        %v645 = vld [vmem:[#allocation2 + $0xe0] sm:$0xff]
        %v646 = vld [vmem:[#allocation2 + $0xe8] sm:$0xff]
        %v647 = vld [vmem:[#allocation2 + $0xf0] sm:$0xff]
        %v648 = vld [vmem:[#allocation2 + $0xf8] sm:$0xff]
        %v649 = vld [vmem:[#allocation2 + $0x100] sm:$0xff]
        %v650 = vld [vmem:[#allocation2 + $0x108] sm:$0xff]
        %v651 = vld [vmem:[#allocation2 + $0x110] sm:$0xff]
        %v652 = vld [vmem:[#allocation2 + $0x118] sm:$0xff]
        %v653 = vld [vmem:[#allocation2 + $0x120] sm:$0xff]
        %v654 = vld [vmem:[#allocation2 + $0x128] sm:$0xff]
        %v655 = vld [vmem:[#allocation2 + $0x130] sm:$0xff]
        %v656 = vld [vmem:[#allocation2 + $0x138] sm:$0xff]
        %v657 = vld [vmem:[#allocation2 + $0x140] sm:$0xff]
        %v658 = vld [vmem:[#allocation2 + $0x148] sm:$0xff]
        %v659 = vld [vmem:[#allocation2 + $0x150] sm:$0xff]
        %v660 = vld [vmem:[#allocation2 + $0x158] sm:$0xff]
        %v661 = vld [vmem:[#allocation2 + $0x160] sm:$0xff]
        %v662 = vld [vmem:[#allocation2 + $0x168] sm:$0xff]
        %v663 = vld [vmem:[#allocation2 + $0x170] sm:$0xff]
        %v664 = vld [vmem:[#allocation2 + $0x178] sm:$0xff]
        %v665 = vld [vmem:[#allocation2 + $0x180] sm:$0xff]
        %v666 = vld [vmem:[#allocation2 + $0x188] sm:$0xff]
        %v667 = vld [vmem:[#allocation2 + $0x190] sm:$0xff]
        %v668 = vld [vmem:[#allocation2 + $0x198] sm:$0xff]
        %v669 = vld [vmem:[#allocation2 + $0x1a0] sm:$0xff]
        %v670 = vld [vmem:[#allocation2 + $0x1a8] sm:$0xff]
        %v671 = vld [vmem:[#allocation2 + $0x1b0] sm:$0xff]
        %v672 = vld [vmem:[#allocation2 + $0x1b8] sm:$0xff]
        %v673 = vld [vmem:[#allocation2 + $0x1c0] sm:$0xff]
        %v674 = vld [vmem:[#allocation2 + $0x1c8] sm:$0xff]
        %v675 = vld [vmem:[#allocation2 + $0x1d0] sm:$0xff]
        %v676 = vld [vmem:[#allocation2 + $0x1d8] sm:$0xff]
        %v677 = vld [vmem:[#allocation2 + $0x1e0] sm:$0xff]
        %v678 = vld [vmem:[#allocation2 + $0x1e8] sm:$0xff]
        %v679 = vld [vmem:[#allocation2 + $0x1f0] sm:$0xff]
        %v680 = vld [vmem:[#allocation2 + $0x1f8] sm:$0xff]
        %v681 = vld [vmem:[%s289] sm:$0xff]
        %v682 = vld [vmem:[%s289 + $0x8] sm:$0xff]
        %v683 = vld [vmem:[%s289 + $0x10] sm:$0xff]
        %v684 = vld [vmem:[%s289 + $0x18] sm:$0xff]
        %v685 = vld [vmem:[%s289 + $0x20] sm:$0xff]
        %v686 = vld [vmem:[%s289 + $0x28] sm:$0xff]
        %v687 = vld [vmem:[%s289 + $0x30] sm:$0xff]
        %v688 = vld [vmem:[%s289 + $0x38] sm:$0xff]
        %v689 = vld [vmem:[%s289 + $0x40] sm:$0xff]
        %v690 = vld [vmem:[%s289 + $0x48] sm:$0xff]
        %v691 = vld [vmem:[%s289 + $0x50] sm:$0xff]
        %v692 = vld [vmem:[%s289 + $0x58] sm:$0xff]
        %v693 = vld [vmem:[%s289 + $0x60] sm:$0xff]
        %v694 = vld [vmem:[%s289 + $0x68] sm:$0xff]
        %v695 = vld [vmem:[%s289 + $0x70] sm:$0xff]
        %v696 = vld [vmem:[%s289 + $0x78] sm:$0xff]
        %v697 = vld [vmem:[%s289 + $0x80] sm:$0xff]
        %v698 = vld [vmem:[%s289 + $0x88] sm:$0xff]
        %v699 = vld [vmem:[%s289 + $0x90] sm:$0xff]
        %v700 = vld [vmem:[%s289 + $0x98] sm:$0xff]
        %v701 = vld [vmem:[%s289 + $0xa0] sm:$0xff]
        %v702 = vld [vmem:[%s289 + $0xa8] sm:$0xff]
        %v703 = vld [vmem:[%s289 + $0xb0] sm:$0xff]
        %v704 = vld [vmem:[%s289 + $0xb8] sm:$0xff]
        %v705 = vld [vmem:[%s289 + $0xc0] sm:$0xff]
        %v706 = vld [vmem:[%s289 + $0xc8] sm:$0xff]
        %v707 = vld [vmem:[%s289 + $0xd0] sm:$0xff]
        %v708 = vld [vmem:[%s289 + $0xd8] sm:$0xff]
        %v709 = vld [vmem:[%s289 + $0xe0] sm:$0xff]
        %v710 = vld [vmem:[%s289 + $0xe8] sm:$0xff]
        %v711 = vld [vmem:[%s289 + $0xf0] sm:$0xff]
        %v712 = vld [vmem:[%s289 + $0xf8] sm:$0xff]
        %v713 = vld [vmem:[%s289 + $0x100] sm:$0xff]
        %v714 = vld [vmem:[%s289 + $0x108] sm:$0xff]
        %v715 = vld [vmem:[%s289 + $0x110] sm:$0xff]
        %v716 = vld [vmem:[%s289 + $0x118] sm:$0xff]
        %v717 = vld [vmem:[%s289 + $0x120] sm:$0xff]
        %v718 = vld [vmem:[%s289 + $0x128] sm:$0xff]
        %v719 = vld [vmem:[%s289 + $0x130] sm:$0xff]
        %v720 = vld [vmem:[%s289 + $0x138] sm:$0xff]
        %v721 = vld [vmem:[%s289 + $0x140] sm:$0xff]
        %v722 = vld [vmem:[%s289 + $0x148] sm:$0xff]
        %v723 = vld [vmem:[%s289 + $0x150] sm:$0xff]
        %v724 = vld [vmem:[%s289 + $0x158] sm:$0xff]
        %v725 = vld [vmem:[%s289 + $0x160] sm:$0xff]
        %v726 = vld [vmem:[%s289 + $0x168] sm:$0xff]
        %v727 = vld [vmem:[%s289 + $0x170] sm:$0xff]
        %v728 = vld [vmem:[%s289 + $0x178] sm:$0xff]
        %v729 = vld [vmem:[%s289 + $0x180] sm:$0xff]
        %v730 = vld [vmem:[%s289 + $0x188] sm:$0xff]
        %v731 = vld [vmem:[%s289 + $0x190] sm:$0xff]
        %v732 = vld [vmem:[%s289 + $0x198] sm:$0xff]
        %v733 = vld [vmem:[%s289 + $0x1a0] sm:$0xff]
        %v734 = vld [vmem:[%s289 + $0x1a8] sm:$0xff]
        %v735 = vld [vmem:[%s289 + $0x1b0] sm:$0xff]
        %v736 = vld [vmem:[%s289 + $0x1b8] sm:$0xff]
        %v737 = vld [vmem:[%s289 + $0x1c0] sm:$0xff]
        %v738 = vld [vmem:[%s289 + $0x1c8] sm:$0xff]
        %v739 = vld [vmem:[%s289 + $0x1d0] sm:$0xff]
        %v740 = vld [vmem:[%s289 + $0x1d8] sm:$0xff]
        %v741 = vld [vmem:[%s289 + $0x1e0] sm:$0xff]
        %v742 = vld [vmem:[%s289 + $0x1e8] sm:$0xff]
        %v743 = vld [vmem:[%s289 + $0x1f0] sm:$0xff]
        %v744 = vld [vmem:[%s289 + $0x1f8] sm:$0xff]
        %v745 = vld [vmem:[%s289 + $0x200] sm:$0xff]
        %v746 = vld [vmem:[%s289 + $0x208] sm:$0xff]
        %v747 = vld [vmem:[%s289 + $0x210] sm:$0xff]
        %v748 = vld [vmem:[%s289 + $0x218] sm:$0xff]
        %v749 = vld [vmem:[%s289 + $0x220] sm:$0xff]
        %v750 = vld [vmem:[%s289 + $0x228] sm:$0xff]
        %v751 = vld [vmem:[%s289 + $0x230] sm:$0xff]
        %v752 = vld [vmem:[%s289 + $0x238] sm:$0xff]
        %v753 = vld [vmem:[%s289 + $0x240] sm:$0xff]
        %v754 = vld [vmem:[%s289 + $0x248] sm:$0xff]
        %v755 = vld [vmem:[%s289 + $0x250] sm:$0xff]
        %v756 = vld [vmem:[%s289 + $0x258] sm:$0xff]
        %v757 = vld [vmem:[%s289 + $0x260] sm:$0xff]
        %v758 = vld [vmem:[%s289 + $0x268] sm:$0xff]
        %v759 = vld [vmem:[%s289 + $0x270] sm:$0xff]
        %v760 = vld [vmem:[%s289 + $0x278] sm:$0xff]
        %v761 = vld [vmem:[%s289 + $0x280] sm:$0xff]
        %v762 = vld [vmem:[%s289 + $0x288] sm:$0xff]
        %v763 = vld [vmem:[%s289 + $0x290] sm:$0xff]
        %v764 = vld [vmem:[%s289 + $0x298] sm:$0xff]
        %v765 = vld [vmem:[%s289 + $0x2a0] sm:$0xff]
        %v766 = vld [vmem:[%s289 + $0x2a8] sm:$0xff]
        %v767 = vld [vmem:[%s289 + $0x2b0] sm:$0xff]
        %v768 = vld [vmem:[%s289 + $0x2b8] sm:$0xff]
        %v769 = vld [vmem:[%s289 + $0x2c0] sm:$0xff]
        %v770 = vld [vmem:[%s289 + $0x2c8] sm:$0xff]
        %v771 = vld [vmem:[%s289 + $0x2d0] sm:$0xff]
        %v772 = vld [vmem:[%s289 + $0x2d8] sm:$0xff]
        %v773 = vld [vmem:[%s289 + $0x2e0] sm:$0xff]
        %v774 = vld [vmem:[%s289 + $0x2e8] sm:$0xff]
        %v775 = vld [vmem:[%s289 + $0x2f0] sm:$0xff]
        %v776 = vld [vmem:[%s289 + $0x2f8] sm:$0xff]
        %v777 = vld [vmem:[%s289 + $0x300] sm:$0xff]
        %v778 = vld [vmem:[%s289 + $0x308] sm:$0xff]
        %v779 = vld [vmem:[%s289 + $0x310] sm:$0xff]
        %v780 = vld [vmem:[%s289 + $0x318] sm:$0xff]
        %v781 = vld [vmem:[%s289 + $0x320] sm:$0xff]
        %v782 = vld [vmem:[%s289 + $0x328] sm:$0xff]
        %v783 = vld [vmem:[%s289 + $0x330] sm:$0xff]
        %v784 = vld [vmem:[%s289 + $0x338] sm:$0xff]
        %v785 = vld [vmem:[%s289 + $0x340] sm:$0xff]
        %v786 = vld [vmem:[%s289 + $0x348] sm:$0xff]
        %v787 = vld [vmem:[%s289 + $0x350] sm:$0xff]
        %v788 = vld [vmem:[%s289 + $0x358] sm:$0xff]
        %v789 = vld [vmem:[%s289 + $0x360] sm:$0xff]
        %v790 = vld [vmem:[%s289 + $0x368] sm:$0xff]
        %v791 = vld [vmem:[%s289 + $0x370] sm:$0xff]
        %v792 = vld [vmem:[%s289 + $0x378] sm:$0xff]
        %v793 = vld [vmem:[%s289 + $0x380] sm:$0xff]
        %v794 = vld [vmem:[%s289 + $0x388] sm:$0xff]
        %v795 = vld [vmem:[%s289 + $0x390] sm:$0xff]
        %v796 = vld [vmem:[%s289 + $0x398] sm:$0xff]
        %v797 = vld [vmem:[%s289 + $0x3a0] sm:$0xff]
        %v798 = vld [vmem:[%s289 + $0x3a8] sm:$0xff]
        %v799 = vld [vmem:[%s289 + $0x3b0] sm:$0xff]
        %v800 = vld [vmem:[%s289 + $0x3b8] sm:$0xff]
        %v801 = vld [vmem:[%s289 + $0x3c0] sm:$0xff]
        %v802 = vld [vmem:[%s289 + $0x3c8] sm:$0xff]
        %v803 = vld [vmem:[%s289 + $0x3d0] sm:$0xff]
        %v804 = vld [vmem:[%s289 + $0x3d8] sm:$0xff]
        %v805 = vld [vmem:[%s289 + $0x3e0] sm:$0xff]
        %v806 = vld [vmem:[%s289 + $0x3e8] sm:$0xff]
        %v807 = vld [vmem:[%s289 + $0x3f0] sm:$0xff]
        %v808 = vld [vmem:[%s289 + $0x3f8] sm:$0xff]
        %v873 = vunpack.c.l.b16 %v617
        %v874 = vunpack.c.h.b16 %v617
        %v875 = vunpack.c.l.b16 %v618
        %v876 = vunpack.c.h.b16 %v618
        %v877 = vunpack.c.l.b16 %v619
        %v878 = vunpack.c.h.b16 %v619
        %v879 = vunpack.c.l.b16 %v620
        %v880 = vunpack.c.h.b16 %v620
        %v881 = vunpack.c.l.b16 %v621
        %v882 = vunpack.c.h.b16 %v621
        %v883 = vunpack.c.l.b16 %v622
        %v884 = vunpack.c.h.b16 %v622
        %v885 = vunpack.c.l.b16 %v623
        %v886 = vunpack.c.h.b16 %v623
        %v887 = vunpack.c.l.b16 %v624
        %v888 = vunpack.c.h.b16 %v624
        %v889 = vunpack.c.l.b16 %v625
        %v890 = vunpack.c.h.b16 %v625
        %v891 = vunpack.c.l.b16 %v626
        %v892 = vunpack.c.h.b16 %v626
        %v893 = vunpack.c.l.b16 %v627
        %v894 = vunpack.c.h.b16 %v627
        %v895 = vunpack.c.l.b16 %v628
        %v896 = vunpack.c.h.b16 %v628
        %v897 = vunpack.c.l.b16 %v629
        %v898 = vunpack.c.h.b16 %v629
        %v899 = vunpack.c.l.b16 %v630
        %v900 = vunpack.c.h.b16 %v630
        %v901 = vunpack.c.l.b16 %v631
        %v902 = vunpack.c.h.b16 %v631
        %v903 = vunpack.c.l.b16 %v632
        %v904 = vunpack.c.h.b16 %v632
        %v905 = vunpack.c.l.b16 %v633
        %v906 = vunpack.c.h.b16 %v633
        %v907 = vunpack.c.l.b16 %v634
        %v908 = vunpack.c.h.b16 %v634
        %v909 = vunpack.c.l.b16 %v635
        %v910 = vunpack.c.h.b16 %v635
        %v911 = vunpack.c.l.b16 %v636
        %v912 = vunpack.c.h.b16 %v636
        %v913 = vunpack.c.l.b16 %v637
        %v914 = vunpack.c.h.b16 %v637
        %v915 = vunpack.c.l.b16 %v638
        %v916 = vunpack.c.h.b16 %v638
        %v917 = vunpack.c.l.b16 %v639
        %v918 = vunpack.c.h.b16 %v639
        %v919 = vunpack.c.l.b16 %v640
        %v920 = vunpack.c.h.b16 %v640
        %v921 = vunpack.c.l.b16 %v641
        %v922 = vunpack.c.h.b16 %v641
        %v923 = vunpack.c.l.b16 %v642
        %v924 = vunpack.c.h.b16 %v642
        %v925 = vunpack.c.l.b16 %v643
        %v926 = vunpack.c.h.b16 %v643
        %v927 = vunpack.c.l.b16 %v644
        %v928 = vunpack.c.h.b16 %v644
        %v929 = vunpack.c.l.b16 %v645
        %v930 = vunpack.c.h.b16 %v645
        %v931 = vunpack.c.l.b16 %v646
        %v932 = vunpack.c.h.b16 %v646
        %v933 = vunpack.c.l.b16 %v647
        %v934 = vunpack.c.h.b16 %v647
        %v935 = vunpack.c.l.b16 %v648
        %v936 = vunpack.c.h.b16 %v648
        %v937 = vunpack.c.l.b16 %v649
        %v938 = vunpack.c.h.b16 %v649
        %v939 = vunpack.c.l.b16 %v650
        %v940 = vunpack.c.h.b16 %v650
        %v941 = vunpack.c.l.b16 %v651
        %v942 = vunpack.c.h.b16 %v651
        %v943 = vunpack.c.l.b16 %v652
        %v944 = vunpack.c.h.b16 %v652
        %v945 = vunpack.c.l.b16 %v653
        %v946 = vunpack.c.h.b16 %v653
        %v947 = vunpack.c.l.b16 %v654
        %v948 = vunpack.c.h.b16 %v654
        %v949 = vunpack.c.l.b16 %v655
        %v950 = vunpack.c.h.b16 %v655
        %v951 = vunpack.c.l.b16 %v656
        %v952 = vunpack.c.h.b16 %v656
        %v953 = vunpack.c.l.b16 %v657
        %v954 = vunpack.c.h.b16 %v657
        %v955 = vunpack.c.l.b16 %v658
        %v956 = vunpack.c.h.b16 %v658
        %v957 = vunpack.c.l.b16 %v659
        %v958 = vunpack.c.h.b16 %v659
        %v959 = vunpack.c.l.b16 %v660
        %v960 = vunpack.c.h.b16 %v660
        %v961 = vunpack.c.l.b16 %v661
        %v962 = vunpack.c.h.b16 %v661
        %v963 = vunpack.c.l.b16 %v662
        %v964 = vunpack.c.h.b16 %v662
        %v965 = vunpack.c.l.b16 %v663
        %v966 = vunpack.c.h.b16 %v663
        %v967 = vunpack.c.l.b16 %v664
        %v968 = vunpack.c.h.b16 %v664
        %v969 = vunpack.c.l.b16 %v665
        %v970 = vunpack.c.h.b16 %v665
        %v971 = vunpack.c.l.b16 %v666
        %v972 = vunpack.c.h.b16 %v666
        %v973 = vunpack.c.l.b16 %v667
        %v974 = vunpack.c.h.b16 %v667
        %v975 = vunpack.c.l.b16 %v668
        %v976 = vunpack.c.h.b16 %v668
        %v977 = vunpack.c.l.b16 %v669
        %v978 = vunpack.c.h.b16 %v669
        %v979 = vunpack.c.l.b16 %v670
        %v980 = vunpack.c.h.b16 %v670
        %v981 = vunpack.c.l.b16 %v671
        %v982 = vunpack.c.h.b16 %v671
        %v983 = vunpack.c.l.b16 %v672
        %v984 = vunpack.c.h.b16 %v672
        %v985 = vunpack.c.l.b16 %v673
        %v986 = vunpack.c.h.b16 %v673
        %v987 = vunpack.c.l.b16 %v674
        %v988 = vunpack.c.h.b16 %v674
        %v989 = vunpack.c.l.b16 %v675
        %v990 = vunpack.c.h.b16 %v675
        %v991 = vunpack.c.l.b16 %v676
        %v992 = vunpack.c.h.b16 %v676
        %v993 = vunpack.c.l.b16 %v677
        %v994 = vunpack.c.h.b16 %v677
        %v995 = vunpack.c.l.b16 %v678
        %v996 = vunpack.c.h.b16 %v678
        %v997 = vunpack.c.l.b16 %v679
        %v998 = vunpack.c.h.b16 %v679
        %v999 = vunpack.c.l.b16 %v680
        %v1000 = vunpack.c.h.b16 %v680
        %v1001 = vpack.c.b16 %v881, %v873
        %v1002 = vpack.c.b16 %v882, %v874
        %v1003 = vpack.c.b16 %v883, %v875
        %v1004 = vpack.c.b16 %v884, %v876
        %v1005 = vpack.c.b16 %v885, %v877
        %v1006 = vpack.c.b16 %v886, %v878
        %v1007 = vpack.c.b16 %v887, %v879
        %v1008 = vpack.c.b16 %v888, %v880
        %v1009 = vpack.c.b16 %v897, %v889
        %v1010 = vpack.c.b16 %v898, %v890
        %v1011 = vpack.c.b16 %v899, %v891
        %v1012 = vpack.c.b16 %v900, %v892
        %v1013 = vpack.c.b16 %v901, %v893
        %v1014 = vpack.c.b16 %v902, %v894
        %v1015 = vpack.c.b16 %v903, %v895
        %v1016 = vpack.c.b16 %v904, %v896
        %v1017 = vpack.c.b16 %v913, %v905
        %v1018 = vpack.c.b16 %v914, %v906
        %v1019 = vpack.c.b16 %v915, %v907
        %v1020 = vpack.c.b16 %v916, %v908
        %v1021 = vpack.c.b16 %v917, %v909
        %v1022 = vpack.c.b16 %v918, %v910
        %v1023 = vpack.c.b16 %v919, %v911
        %v1024 = vpack.c.b16 %v920, %v912
        %v1025 = vpack.c.b16 %v929, %v921
        %v1026 = vpack.c.b16 %v930, %v922
        %v1027 = vpack.c.b16 %v931, %v923
        %v1028 = vpack.c.b16 %v932, %v924
        %v1029 = vpack.c.b16 %v933, %v925
        %v1030 = vpack.c.b16 %v934, %v926
        %v1031 = vpack.c.b16 %v935, %v927
        %v1032 = vpack.c.b16 %v936, %v928
        %v1033 = vpack.c.b16 %v945, %v937
        %v1034 = vpack.c.b16 %v946, %v938
        %v1035 = vpack.c.b16 %v947, %v939
        %v1036 = vpack.c.b16 %v948, %v940
        %v1037 = vpack.c.b16 %v949, %v941
        %v1038 = vpack.c.b16 %v950, %v942
        %v1039 = vpack.c.b16 %v951, %v943
        %v1040 = vpack.c.b16 %v952, %v944
        %v1041 = vpack.c.b16 %v961, %v953
        %v1042 = vpack.c.b16 %v962, %v954
        %v1043 = vpack.c.b16 %v963, %v955
        %v1044 = vpack.c.b16 %v964, %v956
        %v1045 = vpack.c.b16 %v965, %v957
        %v1046 = vpack.c.b16 %v966, %v958
        %v1047 = vpack.c.b16 %v967, %v959
        %v1048 = vpack.c.b16 %v968, %v960
        %v1049 = vpack.c.b16 %v977, %v969
        %v1050 = vpack.c.b16 %v978, %v970
        %v1051 = vpack.c.b16 %v979, %v971
        %v1052 = vpack.c.b16 %v980, %v972
        %v1053 = vpack.c.b16 %v981, %v973
        %v1054 = vpack.c.b16 %v982, %v974
        %v1055 = vpack.c.b16 %v983, %v975
        %v1056 = vpack.c.b16 %v984, %v976
        %v1057 = vpack.c.b16 %v993, %v985
        %v1058 = vpack.c.b16 %v994, %v986
        %v1059 = vpack.c.b16 %v995, %v987
        %v1060 = vpack.c.b16 %v996, %v988
        %v1061 = vpack.c.b16 %v997, %v989
        %v1062 = vpack.c.b16 %v998, %v990
        %v1063 = vpack.c.b16 %v999, %v991
        %v1064 = vpack.c.b16 %v1000, %v992
        %v1257 = vunpack.c.l.b16 %v681
        %v1258 = vunpack.c.h.b16 %v681
        %v1259 = vunpack.c.l.b16 %v682
        %v1260 = vunpack.c.h.b16 %v682
        %v1261 = vunpack.c.l.b16 %v683
        %v1262 = vunpack.c.h.b16 %v683
        %v1263 = vunpack.c.l.b16 %v684
        %v1264 = vunpack.c.h.b16 %v684
        %v1265 = vunpack.c.l.b16 %v685
        %v1266 = vunpack.c.h.b16 %v685
        %v1267 = vunpack.c.l.b16 %v686
        %v1268 = vunpack.c.h.b16 %v686
        %v1269 = vunpack.c.l.b16 %v687
        %v1270 = vunpack.c.h.b16 %v687
        %v1271 = vunpack.c.l.b16 %v688
        %v1272 = vunpack.c.h.b16 %v688
        %v1273 = vunpack.c.l.b16 %v689
        %v1274 = vunpack.c.h.b16 %v689
        %v1275 = vunpack.c.l.b16 %v690
        %v1276 = vunpack.c.h.b16 %v690
        %v1277 = vunpack.c.l.b16 %v691
        %v1278 = vunpack.c.h.b16 %v691
        %v1279 = vunpack.c.l.b16 %v692
        %v1280 = vunpack.c.h.b16 %v692
        %v1281 = vunpack.c.l.b16 %v693
        %v1282 = vunpack.c.h.b16 %v693
        %v1283 = vunpack.c.l.b16 %v694
        %v1284 = vunpack.c.h.b16 %v694
        %v1285 = vunpack.c.l.b16 %v695
        %v1286 = vunpack.c.h.b16 %v695
        %v1287 = vunpack.c.l.b16 %v696
        %v1288 = vunpack.c.h.b16 %v696
        %v1289 = vunpack.c.l.b16 %v697
        %v1290 = vunpack.c.h.b16 %v697
        %v1291 = vunpack.c.l.b16 %v698
        %v1292 = vunpack.c.h.b16 %v698
        %v1293 = vunpack.c.l.b16 %v699
        %v1294 = vunpack.c.h.b16 %v699
        %v1295 = vunpack.c.l.b16 %v700
        %v1296 = vunpack.c.h.b16 %v700
        %v1297 = vunpack.c.l.b16 %v701
        %v1298 = vunpack.c.h.b16 %v701
        %v1299 = vunpack.c.l.b16 %v702
        %v1300 = vunpack.c.h.b16 %v702
        %v1301 = vunpack.c.l.b16 %v703
        %v1302 = vunpack.c.h.b16 %v703
        %v1303 = vunpack.c.l.b16 %v704
        %v1304 = vunpack.c.h.b16 %v704
        %v1305 = vunpack.c.l.b16 %v705
        %v1306 = vunpack.c.h.b16 %v705
        %v1307 = vunpack.c.l.b16 %v706
        %v1308 = vunpack.c.h.b16 %v706
        %v1309 = vunpack.c.l.b16 %v707
        %v1310 = vunpack.c.h.b16 %v707
        %v1311 = vunpack.c.l.b16 %v708
        %v1312 = vunpack.c.h.b16 %v708
        %v1313 = vunpack.c.l.b16 %v709
        %v1314 = vunpack.c.h.b16 %v709
        %v1315 = vunpack.c.l.b16 %v710
        %v1316 = vunpack.c.h.b16 %v710
        %v1317 = vunpack.c.l.b16 %v711
        %v1318 = vunpack.c.h.b16 %v711
        %v1319 = vunpack.c.l.b16 %v712
        %v1320 = vunpack.c.h.b16 %v712
        %v1321 = vunpack.c.l.b16 %v713
        %v1322 = vunpack.c.h.b16 %v713
        %v1323 = vunpack.c.l.b16 %v714
        %v1324 = vunpack.c.h.b16 %v714
        %v1325 = vunpack.c.l.b16 %v715
        %v1326 = vunpack.c.h.b16 %v715
        %v1327 = vunpack.c.l.b16 %v716
        %v1328 = vunpack.c.h.b16 %v716
        %v1329 = vunpack.c.l.b16 %v717
        %v1330 = vunpack.c.h.b16 %v717
        %v1331 = vunpack.c.l.b16 %v718
        %v1332 = vunpack.c.h.b16 %v718
        %v1333 = vunpack.c.l.b16 %v719
        %v1334 = vunpack.c.h.b16 %v719
        %v1335 = vunpack.c.l.b16 %v720
        %v1336 = vunpack.c.h.b16 %v720
        %v1337 = vunpack.c.l.b16 %v721
        %v1338 = vunpack.c.h.b16 %v721
        %v1339 = vunpack.c.l.b16 %v722
        %v1340 = vunpack.c.h.b16 %v722
        %v1341 = vunpack.c.l.b16 %v723
        %v1342 = vunpack.c.h.b16 %v723
        %v1343 = vunpack.c.l.b16 %v724
        %v1344 = vunpack.c.h.b16 %v724
        %v1345 = vunpack.c.l.b16 %v725
        %v1346 = vunpack.c.h.b16 %v725
        %v1347 = vunpack.c.l.b16 %v726
        %v1348 = vunpack.c.h.b16 %v726
        %v1349 = vunpack.c.l.b16 %v727
        %v1350 = vunpack.c.h.b16 %v727
        %v1351 = vunpack.c.l.b16 %v728
        %v1352 = vunpack.c.h.b16 %v728
        %v1353 = vunpack.c.l.b16 %v729
        %v1354 = vunpack.c.h.b16 %v729
        %v1355 = vunpack.c.l.b16 %v730
        %v1356 = vunpack.c.h.b16 %v730
        %v1357 = vunpack.c.l.b16 %v731
        %v1358 = vunpack.c.h.b16 %v731
        %v1359 = vunpack.c.l.b16 %v732
        %v1360 = vunpack.c.h.b16 %v732
        %v1361 = vunpack.c.l.b16 %v733
        %v1362 = vunpack.c.h.b16 %v733
        %v1363 = vunpack.c.l.b16 %v734
        %v1364 = vunpack.c.h.b16 %v734
        %v1365 = vunpack.c.l.b16 %v735
        %v1366 = vunpack.c.h.b16 %v735
        %v1367 = vunpack.c.l.b16 %v736
        %v1368 = vunpack.c.h.b16 %v736
        %v1369 = vunpack.c.l.b16 %v737
        %v1370 = vunpack.c.h.b16 %v737
        %v1371 = vunpack.c.l.b16 %v738
        %v1372 = vunpack.c.h.b16 %v738
        %v1373 = vunpack.c.l.b16 %v739
        %v1374 = vunpack.c.h.b16 %v739
        %v1375 = vunpack.c.l.b16 %v740
        %v1376 = vunpack.c.h.b16 %v740
        %v1377 = vunpack.c.l.b16 %v741
        %v1378 = vunpack.c.h.b16 %v741
        %v1379 = vunpack.c.l.b16 %v742
        %v1380 = vunpack.c.h.b16 %v742
        %v1381 = vunpack.c.l.b16 %v743
        %v1382 = vunpack.c.h.b16 %v743
        %v1383 = vunpack.c.l.b16 %v744
        %v1384 = vunpack.c.h.b16 %v744
        %v1385 = vunpack.c.l.b16 %v745
        %v1386 = vunpack.c.h.b16 %v745
        %v1387 = vunpack.c.l.b16 %v746
        %v1388 = vunpack.c.h.b16 %v746
        %v1389 = vunpack.c.l.b16 %v747
        %v1390 = vunpack.c.h.b16 %v747
        %v1391 = vunpack.c.l.b16 %v748
        %v1392 = vunpack.c.h.b16 %v748
        %v1393 = vunpack.c.l.b16 %v749
        %v1394 = vunpack.c.h.b16 %v749
        %v1395 = vunpack.c.l.b16 %v750
        %v1396 = vunpack.c.h.b16 %v750
        %v1397 = vunpack.c.l.b16 %v751
        %v1398 = vunpack.c.h.b16 %v751
        %v1399 = vunpack.c.l.b16 %v752
        %v1400 = vunpack.c.h.b16 %v752
        %v1401 = vunpack.c.l.b16 %v753
        %v1402 = vunpack.c.h.b16 %v753
        %v1403 = vunpack.c.l.b16 %v754
        %v1404 = vunpack.c.h.b16 %v754
        %v1405 = vunpack.c.l.b16 %v755
        %v1406 = vunpack.c.h.b16 %v755
        %v1407 = vunpack.c.l.b16 %v756
        %v1408 = vunpack.c.h.b16 %v756
        %v1409 = vunpack.c.l.b16 %v757
        %v1410 = vunpack.c.h.b16 %v757
        %v1411 = vunpack.c.l.b16 %v758
        %v1412 = vunpack.c.h.b16 %v758
        %v1413 = vunpack.c.l.b16 %v759
        %v1414 = vunpack.c.h.b16 %v759
        %v1415 = vunpack.c.l.b16 %v760
        %v1416 = vunpack.c.h.b16 %v760
        %v1417 = vunpack.c.l.b16 %v761
        %v1418 = vunpack.c.h.b16 %v761
        %v1419 = vunpack.c.l.b16 %v762
        %v1420 = vunpack.c.h.b16 %v762
        %v1421 = vunpack.c.l.b16 %v763
        %v1422 = vunpack.c.h.b16 %v763
        %v1423 = vunpack.c.l.b16 %v764
        %v1424 = vunpack.c.h.b16 %v764
        %v1425 = vunpack.c.l.b16 %v765
        %v1426 = vunpack.c.h.b16 %v765
        %v1427 = vunpack.c.l.b16 %v766
        %v1428 = vunpack.c.h.b16 %v766
        %v1429 = vunpack.c.l.b16 %v767
        %v1430 = vunpack.c.h.b16 %v767
        %v1431 = vunpack.c.l.b16 %v768
        %v1432 = vunpack.c.h.b16 %v768
        %v1433 = vunpack.c.l.b16 %v769
        %v1434 = vunpack.c.h.b16 %v769
        %v1435 = vunpack.c.l.b16 %v770
        %v1436 = vunpack.c.h.b16 %v770
        %v1437 = vunpack.c.l.b16 %v771
        %v1438 = vunpack.c.h.b16 %v771
        %v1439 = vunpack.c.l.b16 %v772
        %v1440 = vunpack.c.h.b16 %v772
        %v1441 = vunpack.c.l.b16 %v773
        %v1442 = vunpack.c.h.b16 %v773
        %v1443 = vunpack.c.l.b16 %v774
        %v1444 = vunpack.c.h.b16 %v774
        %v1445 = vunpack.c.l.b16 %v775
        %v1446 = vunpack.c.h.b16 %v775
        %v1447 = vunpack.c.l.b16 %v776
        %v1448 = vunpack.c.h.b16 %v776
        %v1449 = vunpack.c.l.b16 %v777
        %v1450 = vunpack.c.h.b16 %v777
        %v1451 = vunpack.c.l.b16 %v778
        %v1452 = vunpack.c.h.b16 %v778
        %v1453 = vunpack.c.l.b16 %v779
        %v1454 = vunpack.c.h.b16 %v779
        %v1455 = vunpack.c.l.b16 %v780
        %v1456 = vunpack.c.h.b16 %v780
        %v1457 = vunpack.c.l.b16 %v781
        %v1458 = vunpack.c.h.b16 %v781
        %v1459 = vunpack.c.l.b16 %v782
        %v1460 = vunpack.c.h.b16 %v782
        %v1461 = vunpack.c.l.b16 %v783
        %v1462 = vunpack.c.h.b16 %v783
        %v1463 = vunpack.c.l.b16 %v784
        %v1464 = vunpack.c.h.b16 %v784
        %v1465 = vunpack.c.l.b16 %v785
        %v1466 = vunpack.c.h.b16 %v785
        %v1467 = vunpack.c.l.b16 %v786
        %v1468 = vunpack.c.h.b16 %v786
        %v1469 = vunpack.c.l.b16 %v787
        %v1470 = vunpack.c.h.b16 %v787
        %v1471 = vunpack.c.l.b16 %v788
        %v1472 = vunpack.c.h.b16 %v788
        %v1473 = vunpack.c.l.b16 %v789
        %v1474 = vunpack.c.h.b16 %v789
        %v1475 = vunpack.c.l.b16 %v790
        %v1476 = vunpack.c.h.b16 %v790
        %v1477 = vunpack.c.l.b16 %v791
        %v1478 = vunpack.c.h.b16 %v791
        %v1479 = vunpack.c.l.b16 %v792
        %v1480 = vunpack.c.h.b16 %v792
        %v1481 = vunpack.c.l.b16 %v793
        %v1482 = vunpack.c.h.b16 %v793
        %v1483 = vunpack.c.l.b16 %v794
        %v1484 = vunpack.c.h.b16 %v794
        %v1485 = vunpack.c.l.b16 %v795
        %v1486 = vunpack.c.h.b16 %v795
        %v1487 = vunpack.c.l.b16 %v796
        %v1488 = vunpack.c.h.b16 %v796
        %v1489 = vunpack.c.l.b16 %v797
        %v1490 = vunpack.c.h.b16 %v797
        %v1491 = vunpack.c.l.b16 %v798
        %v1492 = vunpack.c.h.b16 %v798
        %v1493 = vunpack.c.l.b16 %v799
        %v1494 = vunpack.c.h.b16 %v799
        %v1495 = vunpack.c.l.b16 %v800
        %v1496 = vunpack.c.h.b16 %v800
        %v1497 = vunpack.c.l.b16 %v801
        %v1498 = vunpack.c.h.b16 %v801
        %v1499 = vunpack.c.l.b16 %v802
        %v1500 = vunpack.c.h.b16 %v802
        %v1501 = vunpack.c.l.b16 %v803
        %v1502 = vunpack.c.h.b16 %v803
        %v1503 = vunpack.c.l.b16 %v804
        %v1504 = vunpack.c.h.b16 %v804
        %v1505 = vunpack.c.l.b16 %v805
        %v1506 = vunpack.c.h.b16 %v805
        %v1507 = vunpack.c.l.b16 %v806
        %v1508 = vunpack.c.h.b16 %v806
        %v1509 = vunpack.c.l.b16 %v807
        %v1510 = vunpack.c.h.b16 %v807
        %v1511 = vunpack.c.l.b16 %v808
        %v1512 = vunpack.c.h.b16 %v808
        %v1513 = vpack.c.b16 %v1259, %v1257
        %v1514 = vpack.c.b16 %v1260, %v1258
        %v1515 = vpack.c.b16 %v1263, %v1261
        %v1516 = vpack.c.b16 %v1264, %v1262
        %v1517 = vpack.c.b16 %v1267, %v1265
        %v1518 = vpack.c.b16 %v1268, %v1266
        %v1519 = vpack.c.b16 %v1271, %v1269
        %v1520 = vpack.c.b16 %v1272, %v1270
        %v1521 = vpack.c.b16 %v1275, %v1273
        %v1522 = vpack.c.b16 %v1276, %v1274
        %v1523 = vpack.c.b16 %v1279, %v1277
        %v1524 = vpack.c.b16 %v1280, %v1278
        %v1525 = vpack.c.b16 %v1283, %v1281
        %v1526 = vpack.c.b16 %v1284, %v1282
        %v1527 = vpack.c.b16 %v1287, %v1285
        %v1528 = vpack.c.b16 %v1288, %v1286
        %v1529 = vpack.c.b16 %v1291, %v1289
        %v1530 = vpack.c.b16 %v1292, %v1290
        %v1531 = vpack.c.b16 %v1295, %v1293
        %v1532 = vpack.c.b16 %v1296, %v1294
        %v1533 = vpack.c.b16 %v1299, %v1297
        %v1534 = vpack.c.b16 %v1300, %v1298
        %v1535 = vpack.c.b16 %v1303, %v1301
        %v1536 = vpack.c.b16 %v1304, %v1302
        %v1537 = vpack.c.b16 %v1307, %v1305
        %v1538 = vpack.c.b16 %v1308, %v1306
        %v1539 = vpack.c.b16 %v1311, %v1309
        %v1540 = vpack.c.b16 %v1312, %v1310
        %v1541 = vpack.c.b16 %v1315, %v1313
        %v1542 = vpack.c.b16 %v1316, %v1314
        %v1543 = vpack.c.b16 %v1319, %v1317
        %v1544 = vpack.c.b16 %v1320, %v1318
        %v1545 = vpack.c.b16 %v1323, %v1321
        %v1546 = vpack.c.b16 %v1324, %v1322
        %v1547 = vpack.c.b16 %v1327, %v1325
        %v1548 = vpack.c.b16 %v1328, %v1326
        %v1549 = vpack.c.b16 %v1331, %v1329
        %v1550 = vpack.c.b16 %v1332, %v1330
        %v1551 = vpack.c.b16 %v1335, %v1333
        %v1552 = vpack.c.b16 %v1336, %v1334
        %v1553 = vpack.c.b16 %v1339, %v1337
        %v1554 = vpack.c.b16 %v1340, %v1338
        %v1555 = vpack.c.b16 %v1343, %v1341
        %v1556 = vpack.c.b16 %v1344, %v1342
        %v1557 = vpack.c.b16 %v1347, %v1345
        %v1558 = vpack.c.b16 %v1348, %v1346
        %v1559 = vpack.c.b16 %v1351, %v1349
        %v1560 = vpack.c.b16 %v1352, %v1350
        %v1561 = vpack.c.b16 %v1355, %v1353
        %v1562 = vpack.c.b16 %v1356, %v1354
        %v1563 = vpack.c.b16 %v1359, %v1357
        %v1564 = vpack.c.b16 %v1360, %v1358
        %v1565 = vpack.c.b16 %v1363, %v1361
        %v1566 = vpack.c.b16 %v1364, %v1362
        %v1567 = vpack.c.b16 %v1367, %v1365
        %v1568 = vpack.c.b16 %v1368, %v1366
        %v1569 = vpack.c.b16 %v1371, %v1369
        %v1570 = vpack.c.b16 %v1372, %v1370
        %v1571 = vpack.c.b16 %v1375, %v1373
        %v1572 = vpack.c.b16 %v1376, %v1374
        %v1573 = vpack.c.b16 %v1379, %v1377
        %v1574 = vpack.c.b16 %v1380, %v1378
        %v1575 = vpack.c.b16 %v1383, %v1381
        %v1576 = vpack.c.b16 %v1384, %v1382
        %v1577 = vpack.c.b16 %v1387, %v1385
        %v1578 = vpack.c.b16 %v1388, %v1386
        %v1579 = vpack.c.b16 %v1391, %v1389
        %v1580 = vpack.c.b16 %v1392, %v1390
        %v1581 = vpack.c.b16 %v1395, %v1393
        %v1582 = vpack.c.b16 %v1396, %v1394
        %v1583 = vpack.c.b16 %v1399, %v1397
        %v1584 = vpack.c.b16 %v1400, %v1398
        %v1585 = vpack.c.b16 %v1403, %v1401
        %v1586 = vpack.c.b16 %v1404, %v1402
        %v1587 = vpack.c.b16 %v1407, %v1405
        %v1588 = vpack.c.b16 %v1408, %v1406
        %v1589 = vpack.c.b16 %v1411, %v1409
        %v1590 = vpack.c.b16 %v1412, %v1410
        %v1591 = vpack.c.b16 %v1415, %v1413
        %v1592 = vpack.c.b16 %v1416, %v1414
        %v1593 = vpack.c.b16 %v1419, %v1417
        %v1594 = vpack.c.b16 %v1420, %v1418
        %v1595 = vpack.c.b16 %v1423, %v1421
        %v1596 = vpack.c.b16 %v1424, %v1422
        %v1597 = vpack.c.b16 %v1427, %v1425
        %v1598 = vpack.c.b16 %v1428, %v1426
        %v1599 = vpack.c.b16 %v1431, %v1429
        %v1600 = vpack.c.b16 %v1432, %v1430
        %v1601 = vpack.c.b16 %v1435, %v1433
        %v1602 = vpack.c.b16 %v1436, %v1434
        %v1603 = vpack.c.b16 %v1439, %v1437
        %v1604 = vpack.c.b16 %v1440, %v1438
        %v1605 = vpack.c.b16 %v1443, %v1441
        %v1606 = vpack.c.b16 %v1444, %v1442
        %v1607 = vpack.c.b16 %v1447, %v1445
        %v1608 = vpack.c.b16 %v1448, %v1446
        %v1609 = vpack.c.b16 %v1451, %v1449
        %v1610 = vpack.c.b16 %v1452, %v1450
        %v1611 = vpack.c.b16 %v1455, %v1453
        %v1612 = vpack.c.b16 %v1456, %v1454
        %v1613 = vpack.c.b16 %v1459, %v1457
        %v1614 = vpack.c.b16 %v1460, %v1458
        %v1615 = vpack.c.b16 %v1463, %v1461
        %v1616 = vpack.c.b16 %v1464, %v1462
        %v1617 = vpack.c.b16 %v1467, %v1465
        %v1618 = vpack.c.b16 %v1468, %v1466
        %v1619 = vpack.c.b16 %v1471, %v1469
        %v1620 = vpack.c.b16 %v1472, %v1470
        %v1621 = vpack.c.b16 %v1475, %v1473
        %v1622 = vpack.c.b16 %v1476, %v1474
        %v1623 = vpack.c.b16 %v1479, %v1477
        %v1624 = vpack.c.b16 %v1480, %v1478
        %v1625 = vpack.c.b16 %v1483, %v1481
        %v1626 = vpack.c.b16 %v1484, %v1482
        %v1627 = vpack.c.b16 %v1487, %v1485
        %v1628 = vpack.c.b16 %v1488, %v1486
        %v1629 = vpack.c.b16 %v1491, %v1489
        %v1630 = vpack.c.b16 %v1492, %v1490
        %v1631 = vpack.c.b16 %v1495, %v1493
        %v1632 = vpack.c.b16 %v1496, %v1494
        %v1633 = vpack.c.b16 %v1499, %v1497
        %v1634 = vpack.c.b16 %v1500, %v1498
        %v1635 = vpack.c.b16 %v1503, %v1501
        %v1636 = vpack.c.b16 %v1504, %v1502
        %v1637 = vpack.c.b16 %v1507, %v1505
        %v1638 = vpack.c.b16 %v1508, %v1506
        %v1639 = vpack.c.b16 %v1511, %v1509
        %v1640 = vpack.c.b16 %v1512, %v1510
        %1769 = vmatprep.subr.bf16.mxu0 %v1528
        %1770 = vmatpush1.bf16.msra.mxu0 %v1527
        %1771 = vmatprep.subr.bf16.mxu0 %v1526
        %1772 = vmatpush1.bf16.msra.mxu0 %v1525
        %1773 = vmatprep.subr.bf16.mxu0 %v1524
        %1774 = vmatpush1.bf16.msra.mxu0 %v1523
        %1775 = vmatprep.subr.bf16.mxu0 %v1522
        %1776 = vmatpush1.bf16.msra.mxu0 %v1521
        %1777 = vmatprep.subr.bf16.mxu0 %v1520
        %1778 = vmatpush1.bf16.msra.mxu0 %v1519
        %1779 = vmatprep.subr.bf16.mxu0 %v1518
        %1780 = vmatpush1.bf16.msra.mxu0 %v1517
        %1781 = vmatprep.subr.bf16.mxu0 %v1516
        %1782 = vmatpush1.bf16.msra.mxu0 %v1515
        %1783 = vmatprep.subr.bf16.mxu0 %v1514
        %1784 = vmatpush1.bf16.msra.mxu0 %v1513
        %1785 = vmatprep.subr.bf16.mxu0 %v1544
        %1786 = vmatpush2.bf16.msra.mxu0 %v1543
        %1787 = vmatprep.subr.bf16.mxu0 %v1542
        %1788 = vmatpush2.bf16.msra.mxu0 %v1541
        %1789 = vmatprep.subr.bf16.mxu0 %v1540
        %1790 = vmatpush2.bf16.msra.mxu0 %v1539
        %1791 = vmatprep.subr.bf16.mxu0 %v1538
        %1792 = vmatpush2.bf16.msra.mxu0 %v1537
        %1793 = vmatprep.subr.bf16.mxu0 %v1536
        %1794 = vmatpush2.bf16.msra.mxu0 %v1535
        %1795 = vmatprep.subr.bf16.mxu0 %v1534
        %1796 = vmatpush2.bf16.msra.mxu0 %v1533
        %1797 = vmatprep.subr.bf16.mxu0 %v1532
        %1798 = vmatpush2.bf16.msra.mxu0 %v1531
        %1799 = vmatprep.subr.bf16.mxu0 %v1530
        %1800 = vmatpush2.bf16.msra.mxu0 %v1529
        %1801 = vmatprep.mubr.bf16.mxu0 %v1002
        %1802 = vmatmul.mubr.bf16.gmra.mxu0 %v1001
        %v1803 = vpop.f32.mrf.mxu0
        %v1804 = vadd.f32 0.0, %v1803
        %v1805 = vpop.f32.mrf.mxu0
        %v1806 = vadd.f32 0.0, %v1805
        %v1807 = vpop.f32.mrf.mxu0
        %v1808 = vadd.f32 0.0, %v1807
        %v1809 = vpop.f32.mrf.mxu0
        %v1810 = vadd.f32 0.0, %v1809
        %1811 = vmatprep.mubr.bf16.mxu0 %v1010
        %1812 = vmatmul.mubr.bf16.gmra.mxu0 %v1009
        %v1813 = vpop.f32.mrf.mxu0
        %v1814 = vadd.f32 0.0, %v1813
        %v1815 = vpop.f32.mrf.mxu0
        %v1816 = vadd.f32 0.0, %v1815
        %v1817 = vpop.f32.mrf.mxu0
        %v1818 = vadd.f32 0.0, %v1817
        %v1819 = vpop.f32.mrf.mxu0
        %v1820 = vadd.f32 0.0, %v1819
        %1821 = vmatprep.mubr.bf16.mxu0 %v1018
        %1822 = vmatmul.mubr.bf16.gmra.mxu0 %v1017
        %v1823 = vpop.f32.mrf.mxu0
        %v1824 = vadd.f32 0.0, %v1823
        %v1825 = vpop.f32.mrf.mxu0
        %v1826 = vadd.f32 0.0, %v1825
        %v1827 = vpop.f32.mrf.mxu0
        %v1828 = vadd.f32 0.0, %v1827
        %v1829 = vpop.f32.mrf.mxu0
        %v1830 = vadd.f32 0.0, %v1829
        %1831 = vmatprep.mubr.bf16.mxu0 %v1026
        %1832 = vmatmul.mubr.bf16.gmra.mxu0 %v1025
        %v1833 = vpop.f32.mrf.mxu0
        %v1834 = vadd.f32 0.0, %v1833
        %v1835 = vpop.f32.mrf.mxu0
        %v1836 = vadd.f32 0.0, %v1835
        %v1837 = vpop.f32.mrf.mxu0
        %v1838 = vadd.f32 0.0, %v1837
        %v1839 = vpop.f32.mrf.mxu0
        %v1840 = vadd.f32 0.0, %v1839
        %1841 = vmatprep.mubr.bf16.mxu0 %v1034
        %1842 = vmatmul.mubr.bf16.gmra.mxu0 %v1033
        %v1843 = vpop.f32.mrf.mxu0
        %v1844 = vadd.f32 0.0, %v1843
        %v1845 = vpop.f32.mrf.mxu0
        %v1846 = vadd.f32 0.0, %v1845
        %v1847 = vpop.f32.mrf.mxu0
        %v1848 = vadd.f32 0.0, %v1847
        %v1849 = vpop.f32.mrf.mxu0
        %v1850 = vadd.f32 0.0, %v1849
        %1851 = vmatprep.mubr.bf16.mxu0 %v1042
        %1852 = vmatmul.mubr.bf16.gmra.mxu0 %v1041
        %v1853 = vpop.f32.mrf.mxu0
        %v1854 = vadd.f32 0.0, %v1853
        %v1855 = vpop.f32.mrf.mxu0
        %v1856 = vadd.f32 0.0, %v1855
        %v1857 = vpop.f32.mrf.mxu0
        %v1858 = vadd.f32 0.0, %v1857
        %v1859 = vpop.f32.mrf.mxu0
        %v1860 = vadd.f32 0.0, %v1859
        %1861 = vmatprep.mubr.bf16.mxu0 %v1050
        %1862 = vmatmul.mubr.bf16.gmra.mxu0 %v1049
        %v1863 = vpop.f32.mrf.mxu0
        %v1864 = vadd.f32 0.0, %v1863
        %v1865 = vpop.f32.mrf.mxu0
        %v1866 = vadd.f32 0.0, %v1865
        %v1867 = vpop.f32.mrf.mxu0
        %v1868 = vadd.f32 0.0, %v1867
        %v1869 = vpop.f32.mrf.mxu0
        %v1870 = vadd.f32 0.0, %v1869
        %1871 = vmatprep.mubr.bf16.mxu0 %v1058
        %1872 = vmatmul.mubr.bf16.gmra.mxu0 %v1057
        %v1873 = vpop.f32.mrf.mxu0
        %v1874 = vadd.f32 0.0, %v1873
        %v1875 = vpop.f32.mrf.mxu0
        %v1876 = vadd.f32 0.0, %v1875
        %v1877 = vpop.f32.mrf.mxu0
        %v1878 = vadd.f32 0.0, %v1877
        %v1879 = vpop.f32.mrf.mxu0
        %v1880 = vadd.f32 0.0, %v1879
        %1881 = vdwg.mxu0
        %1882 = vmatprep.subr.bf16.mxu0 %v1560
        %1883 = vmatpush1.bf16.msra.mxu0 %v1559
        %1884 = vmatprep.subr.bf16.mxu0 %v1558
        %1885 = vmatpush1.bf16.msra.mxu0 %v1557
        %1886 = vmatprep.subr.bf16.mxu0 %v1556
        %1887 = vmatpush1.bf16.msra.mxu0 %v1555
        %1888 = vmatprep.subr.bf16.mxu0 %v1554
        %1889 = vmatpush1.bf16.msra.mxu0 %v1553
        %1890 = vmatprep.subr.bf16.mxu0 %v1552
        %1891 = vmatpush1.bf16.msra.mxu0 %v1551
        %1892 = vmatprep.subr.bf16.mxu0 %v1550
        %1893 = vmatpush1.bf16.msra.mxu0 %v1549
        %1894 = vmatprep.subr.bf16.mxu0 %v1548
        %1895 = vmatpush1.bf16.msra.mxu0 %v1547
        %1896 = vmatprep.subr.bf16.mxu0 %v1546
        %1897 = vmatpush1.bf16.msra.mxu0 %v1545
        %1898 = vmatprep.subr.bf16.mxu0 %v1576
        %1899 = vmatpush2.bf16.msra.mxu0 %v1575
        %1900 = vmatprep.subr.bf16.mxu0 %v1574
        %1901 = vmatpush2.bf16.msra.mxu0 %v1573
        %1902 = vmatprep.subr.bf16.mxu0 %v1572
        %1903 = vmatpush2.bf16.msra.mxu0 %v1571
        %1904 = vmatprep.subr.bf16.mxu0 %v1570
        %1905 = vmatpush2.bf16.msra.mxu0 %v1569
        %1906 = vmatprep.subr.bf16.mxu0 %v1568
        %1907 = vmatpush2.bf16.msra.mxu0 %v1567
        %1908 = vmatprep.subr.bf16.mxu0 %v1566
        %1909 = vmatpush2.bf16.msra.mxu0 %v1565
        %1910 = vmatprep.subr.bf16.mxu0 %v1564
        %1911 = vmatpush2.bf16.msra.mxu0 %v1563
        %1912 = vmatprep.subr.bf16.mxu0 %v1562
        %1913 = vmatpush2.bf16.msra.mxu0 %v1561
        %1914 = vmatprep.mubr.bf16.mxu0 %v1004
        %1915 = vmatmul.mubr.bf16.gmra.mxu0 %v1003
        %v1916 = vpop.f32.mrf.mxu0
        %v1917 = vadd.f32 %v1804, %v1916
        %v1918 = vpop.f32.mrf.mxu0
        %v1919 = vadd.f32 %v1806, %v1918
        %v1920 = vpop.f32.mrf.mxu0
        %v1921 = vadd.f32 %v1808, %v1920
        %v1922 = vpop.f32.mrf.mxu0
        %v1923 = vadd.f32 %v1810, %v1922
        %1924 = vmatprep.mubr.bf16.mxu0 %v1012
        %1925 = vmatmul.mubr.bf16.gmra.mxu0 %v1011
        %v1926 = vpop.f32.mrf.mxu0
        %v1927 = vadd.f32 %v1814, %v1926
        %v1928 = vpop.f32.mrf.mxu0
        %v1929 = vadd.f32 %v1816, %v1928
        %v1930 = vpop.f32.mrf.mxu0
        %v1931 = vadd.f32 %v1818, %v1930
        %v1932 = vpop.f32.mrf.mxu0
        %v1933 = vadd.f32 %v1820, %v1932
        %1934 = vmatprep.mubr.bf16.mxu0 %v1020
        %1935 = vmatmul.mubr.bf16.gmra.mxu0 %v1019
        %v1936 = vpop.f32.mrf.mxu0
        %v1937 = vadd.f32 %v1824, %v1936
        %v1938 = vpop.f32.mrf.mxu0
        %v1939 = vadd.f32 %v1826, %v1938
        %v1940 = vpop.f32.mrf.mxu0
        %v1941 = vadd.f32 %v1828, %v1940
        %v1942 = vpop.f32.mrf.mxu0
        %v1943 = vadd.f32 %v1830, %v1942
        %1944 = vmatprep.mubr.bf16.mxu0 %v1028
        %1945 = vmatmul.mubr.bf16.gmra.mxu0 %v1027
        %v1946 = vpop.f32.mrf.mxu0
        %v1947 = vadd.f32 %v1834, %v1946
        %v1948 = vpop.f32.mrf.mxu0
        %v1949 = vadd.f32 %v1836, %v1948
        %v1950 = vpop.f32.mrf.mxu0
        %v1951 = vadd.f32 %v1838, %v1950
        %v1952 = vpop.f32.mrf.mxu0
        %v1953 = vadd.f32 %v1840, %v1952
        %1954 = vmatprep.mubr.bf16.mxu0 %v1036
        %1955 = vmatmul.mubr.bf16.gmra.mxu0 %v1035
        %v1956 = vpop.f32.mrf.mxu0
        %v1957 = vadd.f32 %v1844, %v1956
        %v1958 = vpop.f32.mrf.mxu0
        %v1959 = vadd.f32 %v1846, %v1958
        %v1960 = vpop.f32.mrf.mxu0
        %v1961 = vadd.f32 %v1848, %v1960
        %v1962 = vpop.f32.mrf.mxu0
        %v1963 = vadd.f32 %v1850, %v1962
        %1964 = vmatprep.mubr.bf16.mxu0 %v1044
        %1965 = vmatmul.mubr.bf16.gmra.mxu0 %v1043
        %v1966 = vpop.f32.mrf.mxu0
        %v1967 = vadd.f32 %v1854, %v1966
        %v1968 = vpop.f32.mrf.mxu0
        %v1969 = vadd.f32 %v1856, %v1968
        %v1970 = vpop.f32.mrf.mxu0
        %v1971 = vadd.f32 %v1858, %v1970
        %v1972 = vpop.f32.mrf.mxu0
        %v1973 = vadd.f32 %v1860, %v1972
        %1974 = vmatprep.mubr.bf16.mxu0 %v1052
        %1975 = vmatmul.mubr.bf16.gmra.mxu0 %v1051
        %v1976 = vpop.f32.mrf.mxu0
        %v1977 = vadd.f32 %v1864, %v1976
        %v1978 = vpop.f32.mrf.mxu0
        %v1979 = vadd.f32 %v1866, %v1978
        %v1980 = vpop.f32.mrf.mxu0
        %v1981 = vadd.f32 %v1868, %v1980
        %v1982 = vpop.f32.mrf.mxu0
        %v1983 = vadd.f32 %v1870, %v1982
        %1984 = vmatprep.mubr.bf16.mxu0 %v1060
        %1985 = vmatmul.mubr.bf16.gmra.mxu0 %v1059
        %v1986 = vpop.f32.mrf.mxu0
        %v1987 = vadd.f32 %v1874, %v1986
        %v1988 = vpop.f32.mrf.mxu0
        %v1989 = vadd.f32 %v1876, %v1988
        %v1990 = vpop.f32.mrf.mxu0
        %v1991 = vadd.f32 %v1878, %v1990
        %v1992 = vpop.f32.mrf.mxu0
        %v1993 = vadd.f32 %v1880, %v1992
        %1994 = vdwg.mxu0
        %1995 = vmatprep.subr.bf16.mxu0 %v1592
        %1996 = vmatpush1.bf16.msra.mxu0 %v1591
        %1997 = vmatprep.subr.bf16.mxu0 %v1590
        %1998 = vmatpush1.bf16.msra.mxu0 %v1589
        %1999 = vmatprep.subr.bf16.mxu0 %v1588
        %2000 = vmatpush1.bf16.msra.mxu0 %v1587
        %2001 = vmatprep.subr.bf16.mxu0 %v1586
        %2002 = vmatpush1.bf16.msra.mxu0 %v1585
        %2003 = vmatprep.subr.bf16.mxu0 %v1584
        %2004 = vmatpush1.bf16.msra.mxu0 %v1583
        %2005 = vmatprep.subr.bf16.mxu0 %v1582
        %2006 = vmatpush1.bf16.msra.mxu0 %v1581
        %2007 = vmatprep.subr.bf16.mxu0 %v1580
        %2008 = vmatpush1.bf16.msra.mxu0 %v1579
        %2009 = vmatprep.subr.bf16.mxu0 %v1578
        %2010 = vmatpush1.bf16.msra.mxu0 %v1577
        %2011 = vmatprep.subr.bf16.mxu0 %v1608
        %2012 = vmatpush2.bf16.msra.mxu0 %v1607
        %2013 = vmatprep.subr.bf16.mxu0 %v1606
        %2014 = vmatpush2.bf16.msra.mxu0 %v1605
        %2015 = vmatprep.subr.bf16.mxu0 %v1604
        %2016 = vmatpush2.bf16.msra.mxu0 %v1603
        %2017 = vmatprep.subr.bf16.mxu0 %v1602
        %2018 = vmatpush2.bf16.msra.mxu0 %v1601
        %2019 = vmatprep.subr.bf16.mxu0 %v1600
        %2020 = vmatpush2.bf16.msra.mxu0 %v1599
        %2021 = vmatprep.subr.bf16.mxu0 %v1598
        %2022 = vmatpush2.bf16.msra.mxu0 %v1597
        %2023 = vmatprep.subr.bf16.mxu0 %v1596
        %2024 = vmatpush2.bf16.msra.mxu0 %v1595
        %2025 = vmatprep.subr.bf16.mxu0 %v1594
        %2026 = vmatpush2.bf16.msra.mxu0 %v1593
        %2027 = vmatprep.mubr.bf16.mxu0 %v1006
        %2028 = vmatmul.mubr.bf16.gmra.mxu0 %v1005
        %v2029 = vpop.f32.mrf.mxu0
        %v2030 = vadd.f32 %v1917, %v2029
        %v2031 = vpop.f32.mrf.mxu0
        %v2032 = vadd.f32 %v1919, %v2031
        %v2033 = vpop.f32.mrf.mxu0
        %v2034 = vadd.f32 %v1921, %v2033
        %v2035 = vpop.f32.mrf.mxu0
        %v2036 = vadd.f32 %v1923, %v2035
        %2037 = vmatprep.mubr.bf16.mxu0 %v1014
        %2038 = vmatmul.mubr.bf16.gmra.mxu0 %v1013
        %v2039 = vpop.f32.mrf.mxu0
        %v2040 = vadd.f32 %v1927, %v2039
        %v2041 = vpop.f32.mrf.mxu0
        %v2042 = vadd.f32 %v1929, %v2041
        %v2043 = vpop.f32.mrf.mxu0
        %v2044 = vadd.f32 %v1931, %v2043
        %v2045 = vpop.f32.mrf.mxu0
        %v2046 = vadd.f32 %v1933, %v2045
        %2047 = vmatprep.mubr.bf16.mxu0 %v1022
        %2048 = vmatmul.mubr.bf16.gmra.mxu0 %v1021
        %v2049 = vpop.f32.mrf.mxu0
        %v2050 = vadd.f32 %v1937, %v2049
        %v2051 = vpop.f32.mrf.mxu0
        %v2052 = vadd.f32 %v1939, %v2051
        %v2053 = vpop.f32.mrf.mxu0
        %v2054 = vadd.f32 %v1941, %v2053
        %v2055 = vpop.f32.mrf.mxu0
        %v2056 = vadd.f32 %v1943, %v2055
        %2057 = vmatprep.mubr.bf16.mxu0 %v1030
        %2058 = vmatmul.mubr.bf16.gmra.mxu0 %v1029
        %v2059 = vpop.f32.mrf.mxu0
        %v2060 = vadd.f32 %v1947, %v2059
        %v2061 = vpop.f32.mrf.mxu0
        %v2062 = vadd.f32 %v1949, %v2061
        %v2063 = vpop.f32.mrf.mxu0
        %v2064 = vadd.f32 %v1951, %v2063
        %v2065 = vpop.f32.mrf.mxu0
        %v2066 = vadd.f32 %v1953, %v2065
        %2067 = vmatprep.mubr.bf16.mxu0 %v1038
        %2068 = vmatmul.mubr.bf16.gmra.mxu0 %v1037
        %v2069 = vpop.f32.mrf.mxu0
        %v2070 = vadd.f32 %v1957, %v2069
        %v2071 = vpop.f32.mrf.mxu0
        %v2072 = vadd.f32 %v1959, %v2071
        %v2073 = vpop.f32.mrf.mxu0
        %v2074 = vadd.f32 %v1961, %v2073
        %v2075 = vpop.f32.mrf.mxu0
        %v2076 = vadd.f32 %v1963, %v2075
        %2077 = vmatprep.mubr.bf16.mxu0 %v1046
        %2078 = vmatmul.mubr.bf16.gmra.mxu0 %v1045
        %v2079 = vpop.f32.mrf.mxu0
        %v2080 = vadd.f32 %v1967, %v2079
        %v2081 = vpop.f32.mrf.mxu0
        %v2082 = vadd.f32 %v1969, %v2081
        %v2083 = vpop.f32.mrf.mxu0
        %v2084 = vadd.f32 %v1971, %v2083
        %v2085 = vpop.f32.mrf.mxu0
        %v2086 = vadd.f32 %v1973, %v2085
        %2087 = vmatprep.mubr.bf16.mxu0 %v1054
        %2088 = vmatmul.mubr.bf16.gmra.mxu0 %v1053
        %v2089 = vpop.f32.mrf.mxu0
        %v2090 = vadd.f32 %v1977, %v2089
        %v2091 = vpop.f32.mrf.mxu0
        %v2092 = vadd.f32 %v1979, %v2091
        %v2093 = vpop.f32.mrf.mxu0
        %v2094 = vadd.f32 %v1981, %v2093
        %v2095 = vpop.f32.mrf.mxu0
        %v2096 = vadd.f32 %v1983, %v2095
        %2097 = vmatprep.mubr.bf16.mxu0 %v1062
        %2098 = vmatmul.mubr.bf16.gmra.mxu0 %v1061
        %v2099 = vpop.f32.mrf.mxu0
        %v2100 = vadd.f32 %v1987, %v2099
        %v2101 = vpop.f32.mrf.mxu0
        %v2102 = vadd.f32 %v1989, %v2101
        %v2103 = vpop.f32.mrf.mxu0
        %v2104 = vadd.f32 %v1991, %v2103
        %v2105 = vpop.f32.mrf.mxu0
        %v2106 = vadd.f32 %v1993, %v2105
        %2107 = vdwg.mxu0
        %2108 = vmatprep.subr.bf16.mxu0 %v1624
        %2109 = vmatpush1.bf16.msra.mxu0 %v1623
        %2110 = vmatprep.subr.bf16.mxu0 %v1622
        %2111 = vmatpush1.bf16.msra.mxu0 %v1621
        %2112 = vmatprep.subr.bf16.mxu0 %v1620
        %2113 = vmatpush1.bf16.msra.mxu0 %v1619
        %2114 = vmatprep.subr.bf16.mxu0 %v1618
        %2115 = vmatpush1.bf16.msra.mxu0 %v1617
        %2116 = vmatprep.subr.bf16.mxu0 %v1616
        %2117 = vmatpush1.bf16.msra.mxu0 %v1615
        %2118 = vmatprep.subr.bf16.mxu0 %v1614
        %2119 = vmatpush1.bf16.msra.mxu0 %v1613
        %2120 = vmatprep.subr.bf16.mxu0 %v1612
        %2121 = vmatpush1.bf16.msra.mxu0 %v1611
        %2122 = vmatprep.subr.bf16.mxu0 %v1610
        %2123 = vmatpush1.bf16.msra.mxu0 %v1609
        %2124 = vmatprep.subr.bf16.mxu0 %v1640
        %2125 = vmatpush2.bf16.msra.mxu0 %v1639
        %2126 = vmatprep.subr.bf16.mxu0 %v1638
        %2127 = vmatpush2.bf16.msra.mxu0 %v1637
        %2128 = vmatprep.subr.bf16.mxu0 %v1636
        %2129 = vmatpush2.bf16.msra.mxu0 %v1635
        %2130 = vmatprep.subr.bf16.mxu0 %v1634
        %2131 = vmatpush2.bf16.msra.mxu0 %v1633
        %2132 = vmatprep.subr.bf16.mxu0 %v1632
        %2133 = vmatpush2.bf16.msra.mxu0 %v1631
        %2134 = vmatprep.subr.bf16.mxu0 %v1630
        %2135 = vmatpush2.bf16.msra.mxu0 %v1629
        %2136 = vmatprep.subr.bf16.mxu0 %v1628
        %2137 = vmatpush2.bf16.msra.mxu0 %v1627
        %2138 = vmatprep.subr.bf16.mxu0 %v1626
        %2139 = vmatpush2.bf16.msra.mxu0 %v1625
        %2140 = vmatprep.mubr.bf16.mxu0 %v1008
        %2141 = vmatmul.mubr.bf16.gmra.mxu0 %v1007
        %v2142 = vpop.f32.mrf.mxu0
        %v2143 = vadd.f32 %v2030, %v2142
        %v2144 = vpop.f32.mrf.mxu0
        %v2145 = vadd.f32 %v2032, %v2144
        %v2146 = vpop.f32.mrf.mxu0
        %v2147 = vadd.f32 %v2034, %v2146
        %v2148 = vpop.f32.mrf.mxu0
        %v2149 = vadd.f32 %v2036, %v2148
        %2150 = vmatprep.mubr.bf16.mxu0 %v1016
        %2151 = vmatmul.mubr.bf16.gmra.mxu0 %v1015
        %v2152 = vpop.f32.mrf.mxu0
        %v2153 = vadd.f32 %v2040, %v2152
        %v2154 = vpop.f32.mrf.mxu0
        %v2155 = vadd.f32 %v2042, %v2154
        %v2156 = vpop.f32.mrf.mxu0
        %v2157 = vadd.f32 %v2044, %v2156
        %v2158 = vpop.f32.mrf.mxu0
        %v2159 = vadd.f32 %v2046, %v2158
        %2160 = vmatprep.mubr.bf16.mxu0 %v1024
        %2161 = vmatmul.mubr.bf16.gmra.mxu0 %v1023
        %v2162 = vpop.f32.mrf.mxu0
        %v2163 = vadd.f32 %v2050, %v2162
        %v2164 = vpop.f32.mrf.mxu0
        %v2165 = vadd.f32 %v2052, %v2164
        %v2166 = vpop.f32.mrf.mxu0
        %v2167 = vadd.f32 %v2054, %v2166
        %v2168 = vpop.f32.mrf.mxu0
        %v2169 = vadd.f32 %v2056, %v2168
        %2170 = vmatprep.mubr.bf16.mxu0 %v1032
        %2171 = vmatmul.mubr.bf16.gmra.mxu0 %v1031
        %v2172 = vpop.f32.mrf.mxu0
        %v2173 = vadd.f32 %v2060, %v2172
        %v2174 = vpop.f32.mrf.mxu0
        %v2175 = vadd.f32 %v2062, %v2174
        %v2176 = vpop.f32.mrf.mxu0
        %v2177 = vadd.f32 %v2064, %v2176
        %v2178 = vpop.f32.mrf.mxu0
        %v2179 = vadd.f32 %v2066, %v2178
        %2180 = vmatprep.mubr.bf16.mxu0 %v1040
        %2181 = vmatmul.mubr.bf16.gmra.mxu0 %v1039
        %v2182 = vpop.f32.mrf.mxu0
        %v2183 = vadd.f32 %v2070, %v2182
        %v2184 = vpop.f32.mrf.mxu0
        %v2185 = vadd.f32 %v2072, %v2184
        %v2186 = vpop.f32.mrf.mxu0
        %v2187 = vadd.f32 %v2074, %v2186
        %v2188 = vpop.f32.mrf.mxu0
        %v2189 = vadd.f32 %v2076, %v2188
        %2190 = vmatprep.mubr.bf16.mxu0 %v1048
        %2191 = vmatmul.mubr.bf16.gmra.mxu0 %v1047
        %v2192 = vpop.f32.mrf.mxu0
        %v2193 = vadd.f32 %v2080, %v2192
        %v2194 = vpop.f32.mrf.mxu0
        %v2195 = vadd.f32 %v2082, %v2194
        %v2196 = vpop.f32.mrf.mxu0
        %v2197 = vadd.f32 %v2084, %v2196
        %v2198 = vpop.f32.mrf.mxu0
        %v2199 = vadd.f32 %v2086, %v2198
        %2200 = vmatprep.mubr.bf16.mxu0 %v1056
        %2201 = vmatmul.mubr.bf16.gmra.mxu0 %v1055
        %v2202 = vpop.f32.mrf.mxu0
        %v2203 = vadd.f32 %v2090, %v2202
        %v2204 = vpop.f32.mrf.mxu0
        %v2205 = vadd.f32 %v2092, %v2204
        %v2206 = vpop.f32.mrf.mxu0
        %v2207 = vadd.f32 %v2094, %v2206
        %v2208 = vpop.f32.mrf.mxu0
        %v2209 = vadd.f32 %v2096, %v2208
        %2210 = vmatprep.mubr.bf16.mxu0 %v1064
        %2211 = vmatmul.mubr.bf16.gmra.mxu0 %v1063
        %v2212 = vpop.f32.mrf.mxu0
        %v2213 = vadd.f32 %v2100, %v2212
        %v2214 = vpop.f32.mrf.mxu0
        %v2215 = vadd.f32 %v2102, %v2214
        %v2216 = vpop.f32.mrf.mxu0
        %v2217 = vadd.f32 %v2104, %v2216
        %v2218 = vpop.f32.mrf.mxu0
        %v2219 = vadd.f32 %v2106, %v2218
        %2220 = vdwg.mxu0
        %v2221 = vadd.f32 %v585, %v2143
        %v2222 = vadd.f32 %v586, %v2145
        %v2223 = vadd.f32 %v587, %v2147
        %v2224 = vadd.f32 %v588, %v2149
        %v2225 = vadd.f32 %v589, %v2153
        %v2226 = vadd.f32 %v590, %v2155
        %v2227 = vadd.f32 %v591, %v2157
        %v2228 = vadd.f32 %v592, %v2159
        %v2229 = vadd.f32 %v593, %v2163
        %v2230 = vadd.f32 %v594, %v2165
        %v2231 = vadd.f32 %v595, %v2167
        %v2232 = vadd.f32 %v596, %v2169
        %v2233 = vadd.f32 %v597, %v2173
        %v2234 = vadd.f32 %v598, %v2175
        %v2235 = vadd.f32 %v599, %v2177
        %v2236 = vadd.f32 %v600, %v2179
        %v2237 = vadd.f32 %v601, %v2183
        %v2238 = vadd.f32 %v602, %v2185
        %v2239 = vadd.f32 %v603, %v2187
        %v2240 = vadd.f32 %v604, %v2189
        %v2241 = vadd.f32 %v605, %v2193
        %v2242 = vadd.f32 %v606, %v2195
        %v2243 = vadd.f32 %v607, %v2197
        %v2244 = vadd.f32 %v608, %v2199
        %v2245 = vadd.f32 %v609, %v2203
        %v2246 = vadd.f32 %v610, %v2205
        %v2247 = vadd.f32 %v611, %v2207
        %v2248 = vadd.f32 %v612, %v2209
        %v2249 = vadd.f32 %v613, %v2213
        %v2250 = vadd.f32 %v614, %v2215
        %v2251 = vadd.f32 %v615, %v2217
        %v2252 = vadd.f32 %v616, %v2219
        %2253 = vst [vmem:[%s331] sm:$0xff] %v2221
        %2254 = vst [vmem:[%s331 + $0x8] sm:$0xff] %v2222
        %2255 = vst [vmem:[%s331 + $0x10] sm:$0xff] %v2223
        %2256 = vst [vmem:[%s331 + $0x18] sm:$0xff] %v2224
        %2257 = vst [vmem:[%s331 + $0x20] sm:$0xff] %v2225
        %2258 = vst [vmem:[%s331 + $0x28] sm:$0xff] %v2226
        %2259 = vst [vmem:[%s331 + $0x30] sm:$0xff] %v2227
        %2260 = vst [vmem:[%s331 + $0x38] sm:$0xff] %v2228
        %2261 = vst [vmem:[%s331 + $0x40] sm:$0xff] %v2229
        %2262 = vst [vmem:[%s331 + $0x48] sm:$0xff] %v2230
        %2263 = vst [vmem:[%s331 + $0x50] sm:$0xff] %v2231
        %2264 = vst [vmem:[%s331 + $0x58] sm:$0xff] %v2232
        %2265 = vst [vmem:[%s331 + $0x60] sm:$0xff] %v2233
        %2266 = vst [vmem:[%s331 + $0x68] sm:$0xff] %v2234
        %2267 = vst [vmem:[%s331 + $0x70] sm:$0xff] %v2235
        %2268 = vst [vmem:[%s331 + $0x78] sm:$0xff] %v2236
        %2269 = vst [vmem:[%s331 + $0x80] sm:$0xff] %v2237
        %2270 = vst [vmem:[%s331 + $0x88] sm:$0xff] %v2238
        %2271 = vst [vmem:[%s331 + $0x90] sm:$0xff] %v2239
        %2272 = vst [vmem:[%s331 + $0x98] sm:$0xff] %v2240
        %2273 = vst [vmem:[%s331 + $0xa0] sm:$0xff] %v2241
        %2274 = vst [vmem:[%s331 + $0xa8] sm:$0xff] %v2242
        %2275 = vst [vmem:[%s331 + $0xb0] sm:$0xff] %v2243
        %2276 = vst [vmem:[%s331 + $0xb8] sm:$0xff] %v2244
        %2277 = vst [vmem:[%s331 + $0xc0] sm:$0xff] %v2245
        %2278 = vst [vmem:[%s331 + $0xc8] sm:$0xff] %v2246
        %2279 = vst [vmem:[%s331 + $0xd0] sm:$0xff] %v2247
        %2280 = vst [vmem:[%s331 + $0xd8] sm:$0xff] %v2248
        %2281 = vst [vmem:[%s331 + $0xe0] sm:$0xff] %v2249
        %2282 = vst [vmem:[%s331 + $0xe8] sm:$0xff] %v2250
        %2283 = vst [vmem:[%s331 + $0xf0] sm:$0xff] %v2251
        %2284 = vst [vmem:[%s331 + $0xf8] sm:$0xff] %v2252
        %s2285 = sand.u32 %s162, 1
        %s2286 = scalar_lea.sflag [#allocation4], %s2285
        %s2287 = sand.u32 %s162, 1
        %s2288 = smul.addr %s2287, 256
        %s2289 = scalar_lea.vmem [#allocation10], %s2288
        // Predicated region
        $region57: #{tpu_custom_call.1} parent=35 // pred_check
          %p2290 = pneg %p172
        $region58: #{tpu_custom_call.1} parent=35 // pred_check_branch
          %2292 = sbr.rel (%p2290) target = $region60
        $region59: #{tpu_custom_call.1} parent=35 // pred_region
          %s2293 = smul.u32 16, %s30
          %s2294 = smul.u32 2, %s31
          %s2296 = ssub.s32 4096, 4096
          %2297 = vsyncadd %s2286, %s2296
          %s2298 = smul.addr %s2293, 4
          %s2299 = sadd.s32 %s2294, %s2298
          %s2300 = smul.addr %s2299, 128
          %s2301 = scalar_lea.hbm %s4, %s2300
          %s2302 = sshll.u32 %s2289, 4
          %s2303 = int_to_ptr.vmem [resolvable:$true] %s2302
          %2308 = dma.vmem_to_hbm [thread:$0]  %s2303, 4096, %s2301, %s2286, 256, 512, 16
        $region60: #{tpu_custom_call.1} parent=35 // pred_fallthru
          _
      $region36: #{tpu_custom_call.1} parent=5 // pred_fallthru
        _
      %p2309 = scmp.le.s32.totalorder 2, %s20
      // Predicated region
      $region61: #{tpu_custom_call.1} parent=5 // pred_check
        %p2310 = pneg %p2309
      $region62: #{tpu_custom_call.1} parent=5 // pred_check_branch
        %2312 = sbr.rel (%p2310) target = $region64
      $region63: #{tpu_custom_call.1} parent=5 // pred_region
        %s2313 = ssub.s32 %s20, 2
        // Predicated region
        $region65: #{tpu_custom_call.1} parent=63 // pred_check
          %p2314 = pneg %p178
        $region66: #{tpu_custom_call.1} parent=63 // pred_check_branch
          %2316 = sbr.rel (%p2314) target = $region68
        $region67: #{tpu_custom_call.1} parent=63 // pred_region
          %s2317 = sand.u32 %s163, 1
          %s2318 = scalar_lea.sflag [#allocation4], %s2317
          %s2319 = sand.u32 %s163, 1
          %s2320 = smul.addr %s2319, 256
          %s2321 = scalar_lea.vmem [#allocation10], %s2320
          %2322 = dma.done %s2318, 4096
        $region68: #{tpu_custom_call.1} parent=63 // pred_fallthru
          _
      $region64: #{tpu_custom_call.1} parent=5 // pred_fallthru
        _
    $region6: #{tpu_custom_call.1} parent=1 // loop_footer
      %s24 = sadd.s32 1, %s20
    $region7: #{tpu_custom_call.1} parent=1 // loop_footer_branch
      %19 = sbr.rel target = $region3
    $region8: #{tpu_custom_call.1} parent=1 // loop_exit
      _
    %2323 = vsyncpa [#allocation3], 1
    %s2324 = scalar_lea.sflag [#allocation3], 1
    %2325 = vsyncpa %s2324, 1
    %2326 = vsyncpa [#allocation6], 1
    %s2327 = scalar_lea.sflag [#allocation6], 1
    %2328 = vsyncpa %s2327, 1
    %2329 = vsyncpa [#allocation9], 1
    %s2330 = scalar_lea.sflag [#allocation9], 1
    %2331 = vsyncpa %s2330, 1
    %2332 = vsyncpa [#allocation4], 1
    %s2333 = scalar_lea.sflag [#allocation4], 1
    %2334 = vsyncpa %s2333, 1

</llo_original>
